<compile_context>
chip_gen: v7x
topology: tpu7x:2x2x1
jax: 0.10.0
libtpu: 0.0.40
codegen_flags: <defaults>
</compile_context>

<pallas_src>
import jax
import jax.numpy as jnp
from jax.experimental import pallas as pl
from jax.experimental.pallas import tpu as pltpu

IN_FEATURES = 3904
OUT_FEATURES = 2
PAD = 128            # hidden dims 100/100/64 and output dim 2 padded to one lane tile
K_CHUNK = 1024       # layer-1 contraction chunk (avoids a full-tile bf16 temp)


def _mlp_kernel(x_ref, w1_ref, w2_ref, w3_ref, w4_ref, b_ref, o_ref):
    b = b_ref[...]                                   # (4, 128) f32, single small DMA
    K = x_ref.shape[1]

    # ---- layer 1: chunk K so only a (tm, K_CHUNK) bf16 temp is live at a time.
    h = None
    for c0 in range(0, K, K_CHUNK):
        cw = min(K_CHUNK, K - c0)
        xc = x_ref[:, c0:c0 + cw]
        if xc.dtype != jnp.bfloat16:                 # no-op when producer feeds bf16
            xc = xc.astype(jnp.bfloat16)
        part = jnp.dot(xc, w1_ref[c0:c0 + cw, :],
                       preferred_element_type=jnp.float32)
        h = part if h is None else h + part
    h = h + b[0:1, :]

    # ---- layers 2..4: tiny 128x128 matmuls, bf16 in / f32 accumulate.
    h = jnp.dot(h.astype(jnp.bfloat16), w2_ref[...],
                preferred_element_type=jnp.float32) + b[1:2, :]
    h = jnp.dot(h.astype(jnp.bfloat16), w3_ref[...],
                preferred_element_type=jnp.float32) + b[2:3, :]
    h = jnp.dot(h.astype(jnp.bfloat16), w4_ref[...],
                preferred_element_type=jnp.float32) + b[3:4, :]

    # True (tm, 2) output; tiny masked store hides under the x DMA.
    o_ref[...] = h[:, :OUT_FEATURES].astype(o_ref.dtype)


def _generation_config():
    """Tile cap / VMEM limit / minimum grid length, derived per TPU generation."""
    try:
        cap = pltpu.get_tpu_info().vmem_capacity_bytes
    except Exception:
        cap = 64 << 20                               # conservative (v7x per-TC VMEM)
    if cap >= (100 << 20):
        # v5e / v6e: 128 MiB VMEM, single TensorCore -> big tiles, grid=1 is fine.
        return {"tm_cap": 1024, "vmem_limit": 64 << 20, "min_grid": 1}
    # v7x: 64 MiB VMEM per TensorCore, two TCs -> keep >= 4 grid steps.
    return {"tm_cap": 512, "vmem_limit": 48 << 20, "min_grid": 4}


def _pick_tile(B, cfg):
    if B <= 128:
        return B                                     # single step, all resident
    if cfg["min_grid"] <= 1:
        return min(B, cfg["tm_cap"])                 # single-TC: maximize the tile
    # two-TC chips: >= min_grid steps (megacore split + pipelined x fetches)
    tm = max(128, ((B // cfg["min_grid"]) // 128) * 128)
    return min(cfg["tm_cap"], tm)


def _x_spec(tm, K, deep):
    if deep:
        try:
            return pl.BlockSpec((tm, K), lambda i: (i, 0),
                                pipeline_mode=pl.Buffered(3))
        except (TypeError, AttributeError):
            pass                                     # older BlockSpec: no pipeline_mode
    return pl.BlockSpec((tm, K), lambda i: (i, 0))


def embedding_classifier_forward(x, params):
    """x: (B, 3904) float32 or bfloat16 -> (B, 2) float32."""
    B, K = x.shape
    w1, w2, w3, w4, b = (params["w1"], params["w2"], params["w3"],
                         params["w4"], params["b"])

    cfg = _generation_config()
    tm = _pick_tile(B, cfg)
    grid_steps = pl.cdiv(B, tm)
    deep = (grid_steps >= 3) and (tm <= 512)         # Buffered(3) on the x stream

    def resident(a):                                 # constant index_map -> VMEM-resident
        return pl.BlockSpec(a.shape, lambda i: (0,) * a.ndim)

    flops = 2 * B * (K * PAD + 3 * PAD * PAD)
    bytes_accessed = (x.size * x.dtype.itemsize                 # activations in
                      + sum(w.size * 2 for w in (w1, w2, w3, w4))  # bf16 weights
                      + b.size * 4
                      + B * OUT_FEATURES * 4)                   # (B, 2) f32 out

    def build(deep_pipeline):
        return pl.pallas_call(
            _mlp_kernel,
            out_shape=jax.ShapeDtypeStruct((B, OUT_FEATURES), jnp.float32),
            grid=(grid_steps,),
            in_specs=[
                _x_spec(tm, K, deep_pipeline),
                resident(w1), resident(w2), resident(w3), resident(w4),
                resident(b),
            ],
            out_specs=pl.BlockSpec((tm, OUT_FEATURES), lambda i: (i, 0)),
            compiler_params=pltpu.CompilerParams(
                dimension_semantics=("parallel",),
                vmem_limit_bytes=cfg["vmem_limit"],
            ),
            cost_estimate=pl.CostEstimate(
                flops=flops, transcendentals=0, bytes_accessed=bytes_accessed),
        )

    if deep:
        try:
            return build(True)(x, w1, w2, w3, w4, b)
        except Exception:
            pass                                     # fall back to default 2-deep pipeline
    return build(False)(x, w1, w2, w3, w4, b)


def init_params(key):
    """nn.Linear-style init; weights stored transposed, lane-padded, bf16."""
    dims = [(IN_FEATURES, 100), (100, 100), (100, 64), (64, 2)]
    params = {}
    bias_rows = []
    for i, (fan_in, fan_out) in enumerate(dims, start=1):
        key, kw, kb = jax.random.split(key, 3)
        bound = 1.0 / jnp.sqrt(fan_in)
        w = jax.random.uniform(kw, (fan_in, fan_out), jnp.float32, -bound, bound)
        bvec = jax.random.uniform(kb, (fan_out,), jnp.float32, -bound, bound)
        in_pad = fan_in if i == 1 else PAD            # layer 1 keeps K=3904
        w_pad = jnp.zeros((in_pad, PAD), jnp.float32).at[:fan_in, :fan_out].set(w)
        params[f"w{i}"] = w_pad.astype(jnp.bfloat16)  # zero padding exact in bf16
        bias_rows.append(jnp.zeros((PAD,), jnp.float32).at[:fan_out].set(bvec))
    params["b"] = jnp.stack(bias_rows)                # (4, 128) f32
    return params


def reference_forward(x, params):
    """Pure-JAX reference with the same bf16-weight / f32-accum contract."""
    # TODO(synk): torch runs layer 1 fully in f32; this bf16-input contract
    # deviates at ~1e-3 absolute (covered by the test tolerance).
    b = params["b"]
    h = x.astype(jnp.bfloat16)
    for i in range(1, 5):
        h = jnp.dot(h, params[f"w{i}"], preferred_element_type=jnp.float32) + b[i - 1]
        if i < 4:
            h = h.astype(jnp.bfloat16)
    return h[:, :OUT_FEATURES]


if __name__ == "__main__":
    key = jax.random.PRNGKey(0)
    key, kx = jax.random.split(key)
    params = init_params(key)

    # Small batch: single grid step, everything resident in VMEM.
    x_small = jax.random.normal(kx, (8, IN_FEATURES), jnp.float32)
    out_small = jax.block_until_ready(embedding_classifier_forward(x_small, params))
    ref_small = reference_forward(x_small, params)
    assert out_small.shape == (8, 2)
    assert jnp.allclose(out_small, ref_small, atol=1e-2, rtol=1e-2)

    # Larger batch: gridded path (>= 4 steps on v7x -> both cores busy, x DMA
    # double/triple buffered), f32 activations.
    key, kx2 = jax.random.split(key)
    x_big = jax.random.normal(kx2, (512, IN_FEATURES), jnp.float32)
    out_big = jax.block_until_ready(embedding_classifier_forward(x_big, params))
    ref_big = reference_forward(x_big, params)
    assert out_big.shape == (512, 2)
    assert jnp.allclose(out_big, ref_big, atol=1e-2, rtol=1e-2)

    # Producer-side bf16 activations (recommended contract: halves HBM bytes).
    out_bf16 = jax.block_until_ready(
        embedding_classifier_forward(x_big.astype(jnp.bfloat16), params))
    assert out_bf16.shape == (512, 2)
    assert jnp.allclose(out_bf16, ref_big, atol=1e-2, rtol=1e-2)

    print("KERNEL_OK")
</pallas_src>

<mosaic_0001>
module attributes {stable_mosaic.version = 11 : i64} {
  func.func @_mlp_kernel(%arg0: i32, %arg1: memref<8x3904xf32, #tpu.memory_space<vmem>>, %arg2: memref<3904x128xbf16, #tpu.memory_space<vmem>>, %arg3: memref<128x128xbf16, #tpu.memory_space<vmem>>, %arg4: memref<128x128xbf16, #tpu.memory_space<vmem>>, %arg5: memref<128x128xbf16, #tpu.memory_space<vmem>>, %arg6: memref<4x128xf32, #tpu.memory_space<vmem>>, %arg7: memref<8x2xf32, #tpu.memory_space<vmem>>) attributes {dimension_semantics = [#tpu.dimension_semantics<parallel>], iteration_bounds = array<i64: 1>, scalar_prefetch = 0 : i64, scratch_operands = 0 : i64, tpu.core_type = #tpu.core_type<tc>, window_params = [{transform_indices = @transform_0, window_bounds = array<i64: 8, 3904>}, {pipeline_mode = #tpu.pipeline_mode<synchronous>, transform_indices = @transform_1, window_bounds = array<i64: 3904, 128>}, {pipeline_mode = #tpu.pipeline_mode<synchronous>, transform_indices = @transform_2, window_bounds = array<i64: 128, 128>}, {pipeline_mode = #tpu.pipeline_mode<synchronous>, transform_indices = @transform_3, window_bounds = array<i64: 128, 128>}, {pipeline_mode = #tpu.pipeline_mode<synchronous>, transform_indices = @transform_4, window_bounds = array<i64: 128, 128>}, {pipeline_mode = #tpu.pipeline_mode<synchronous>, transform_indices = @transform_5, window_bounds = array<i64: 4, 128>}, {transform_indices = @transform_6, window_bounds = array<i64: 8, 2>}]} {
    %c0 = arith.constant 0 : index
    %c0_0 = arith.constant 0 : index
    %0 = vector.load %arg6[%c0, %c0_0] : memref<4x128xf32, #tpu.memory_space<vmem>>, vector<4x128xf32>
    %c0_1 = arith.constant 0 : index
    %c0_2 = arith.constant 0 : index
    %1 = vector.load %arg1[%c0_1, %c0_2] : memref<8x3904xf32, #tpu.memory_space<vmem>>, vector<8x1024xf32>
    %2 = arith.truncf %1 : vector<8x1024xf32> to vector<8x1024xbf16>
    %c0_3 = arith.constant 0 : index
    %c0_4 = arith.constant 0 : index
    %3 = vector.load %arg2[%c0_3, %c0_4] : memref<3904x128xbf16, #tpu.memory_space<vmem>>, vector<1024x128xbf16>
    %cst = arith.constant dense<0.000000e+00> : vector<8x128xf32>
    %4 = tpu.matmul %2, %3, %cst {dimension_numbers = #tpu.dot_dimension_numbers<[1], [0], [0], [1], [0, 0, 1, 1], [], []>} : vector<8x1024xbf16>, vector<1024x128xbf16>, vector<8x128xf32> -> vector<8x128xf32>
    %c0_5 = arith.constant 0 : index
    %c1024 = arith.constant 1024 : index
    %5 = vector.load %arg1[%c0_5, %c1024] : memref<8x3904xf32, #tpu.memory_space<vmem>>, vector<8x1024xf32>
    %6 = arith.truncf %5 : vector<8x1024xf32> to vector<8x1024xbf16>
    %c1024_6 = arith.constant 1024 : index
    %c0_7 = arith.constant 0 : index
    %7 = vector.load %arg2[%c1024_6, %c0_7] : memref<3904x128xbf16, #tpu.memory_space<vmem>>, vector<1024x128xbf16>
    %cst_8 = arith.constant dense<0.000000e+00> : vector<8x128xf32>
    %8 = tpu.matmul %6, %7, %cst_8 {dimension_numbers = #tpu.dot_dimension_numbers<[1], [0], [0], [1], [0, 0, 1, 1], [], []>} : vector<8x1024xbf16>, vector<1024x128xbf16>, vector<8x128xf32> -> vector<8x128xf32>
    %9 = arith.addf %4, %8 : vector<8x128xf32>
    %c0_9 = arith.constant 0 : index
    %c2048 = arith.constant 2048 : index
    %10 = vector.load %arg1[%c0_9, %c2048] : memref<8x3904xf32, #tpu.memory_space<vmem>>, vector<8x1024xf32>
    %11 = arith.truncf %10 : vector<8x1024xf32> to vector<8x1024xbf16>
    %c2048_10 = arith.constant 2048 : index
    %c0_11 = arith.constant 0 : index
    %12 = vector.load %arg2[%c2048_10, %c0_11] : memref<3904x128xbf16, #tpu.memory_space<vmem>>, vector<1024x128xbf16>
    %cst_12 = arith.constant dense<0.000000e+00> : vector<8x128xf32>
    %13 = tpu.matmul %11, %12, %cst_12 {dimension_numbers = #tpu.dot_dimension_numbers<[1], [0], [0], [1], [0, 0, 1, 1], [], []>} : vector<8x1024xbf16>, vector<1024x128xbf16>, vector<8x128xf32> -> vector<8x128xf32>
    %14 = arith.addf %9, %13 : vector<8x128xf32>
    %c0_13 = arith.constant 0 : index
    %c3072 = arith.constant 3072 : index
    %15 = vector.load %arg1[%c0_13, %c3072] : memref<8x3904xf32, #tpu.memory_space<vmem>>, vector<8x832xf32>
    %16 = arith.truncf %15 : vector<8x832xf32> to vector<8x832xbf16>
    %c3072_14 = arith.constant 3072 : index
    %c0_15 = arith.constant 0 : index
    %17 = vector.load %arg2[%c3072_14, %c0_15] : memref<3904x128xbf16, #tpu.memory_space<vmem>>, vector<832x128xbf16>
    %cst_16 = arith.constant dense<0.000000e+00> : vector<8x128xf32>
    %18 = tpu.matmul %16, %17, %cst_16 {dimension_numbers = #tpu.dot_dimension_numbers<[1], [0], [0], [1], [0, 0, 1, 1], [], []>} : vector<8x832xbf16>, vector<832x128xbf16>, vector<8x128xf32> -> vector<8x128xf32>
    %19 = arith.addf %14, %18 : vector<8x128xf32>
    %20 = vector.extract_strided_slice %0 {offsets = [0, 0], sizes = [1, 128], strides = [1, 1]} : vector<4x128xf32> to vector<1x128xf32>
    %21 = vector.broadcast %20 : vector<1x128xf32> to vector<8x128xf32>
    %22 = arith.addf %19, %21 : vector<8x128xf32>
    %23 = arith.truncf %22 : vector<8x128xf32> to vector<8x128xbf16>
    %c0_17 = arith.constant 0 : index
    %c0_18 = arith.constant 0 : index
    %24 = vector.load %arg3[%c0_17, %c0_18] : memref<128x128xbf16, #tpu.memory_space<vmem>>, vector<128x128xbf16>
    %cst_19 = arith.constant dense<0.000000e+00> : vector<8x128xf32>
    %25 = tpu.matmul %23, %24, %cst_19 {dimension_numbers = #tpu.dot_dimension_numbers<[1], [0], [0], [1], [0, 0, 1, 1], [], []>} : vector<8x128xbf16>, vector<128x128xbf16>, vector<8x128xf32> -> vector<8x128xf32>
    %26 = vector.extract_strided_slice %0 {offsets = [1, 0], sizes = [1, 128], strides = [1, 1]} : vector<4x128xf32> to vector<1x128xf32>
    %27 = vector.broadcast %26 : vector<1x128xf32> to vector<8x128xf32>
    %28 = arith.addf %25, %27 : vector<8x128xf32>
    %29 = arith.truncf %28 : vector<8x128xf32> to vector<8x128xbf16>
    %c0_20 = arith.constant 0 : index
    %c0_21 = arith.constant 0 : index
    %30 = vector.load %arg4[%c0_20, %c0_21] : memref<128x128xbf16, #tpu.memory_space<vmem>>, vector<128x128xbf16>
    %cst_22 = arith.constant dense<0.000000e+00> : vector<8x128xf32>
    %31 = tpu.matmul %29, %30, %cst_22 {dimension_numbers = #tpu.dot_dimension_numbers<[1], [0], [0], [1], [0, 0, 1, 1], [], []>} : vector<8x128xbf16>, vector<128x128xbf16>, vector<8x128xf32> -> vector<8x128xf32>
    %32 = vector.extract_strided_slice %0 {offsets = [2, 0], sizes = [1, 128], strides = [1, 1]} : vector<4x128xf32> to vector<1x128xf32>
    %33 = vector.broadcast %32 : vector<1x128xf32> to vector<8x128xf32>
    %34 = arith.addf %31, %33 : vector<8x128xf32>
    %35 = arith.truncf %34 : vector<8x128xf32> to vector<8x128xbf16>
    %c0_23 = arith.constant 0 : index
    %c0_24 = arith.constant 0 : index
    %36 = vector.load %arg5[%c0_23, %c0_24] : memref<128x128xbf16, #tpu.memory_space<vmem>>, vector<128x128xbf16>
    %cst_25 = arith.constant dense<0.000000e+00> : vector<8x128xf32>
    %37 = tpu.matmul %35, %36, %cst_25 {dimension_numbers = #tpu.dot_dimension_numbers<[1], [0], [0], [1], [0, 0, 1, 1], [], []>} : vector<8x128xbf16>, vector<128x128xbf16>, vector<8x128xf32> -> vector<8x128xf32>
    %38 = vector.extract_strided_slice %0 {offsets = [3, 0], sizes = [1, 128], strides = [1, 1]} : vector<4x128xf32> to vector<1x128xf32>
    %39 = vector.broadcast %38 : vector<1x128xf32> to vector<8x128xf32>
    %40 = arith.addf %37, %39 : vector<8x128xf32>
    %41 = vector.extract_strided_slice %40 {offsets = [0, 0], sizes = [8, 2], strides = [1, 1]} : vector<8x128xf32> to vector<8x2xf32>
    %c0_26 = arith.constant 0 : index
    %c0_27 = arith.constant 0 : index
    %42 = vector.load %arg7[%c0_26, %c0_27] : memref<8x2xf32, #tpu.memory_space<vmem>>, vector<8x2xf32>
    tpu.vector_store %arg7[%c0_26, %c0_27], %41 {strides = array<i32>} : memref<8x2xf32, #tpu.memory_space<vmem>>, vector<8x2xf32>,
    return
  }
  func.func @transform_0(%arg0: i32) -> (i32, i32) {
    %c0_i32 = arith.constant 0 : i32
    %c0_i32_0 = arith.constant 0 : i32
    return %arg0, %c0_i32 : i32, i32
  }
  func.func @transform_1(%arg0: i32) -> (i32, i32) {
    %c0_i32 = arith.constant 0 : i32
    %c0_i32_0 = arith.constant 0 : i32
    %c0_i32_1 = arith.constant 0 : i32
    return %c0_i32, %c0_i32_0 : i32, i32
  }
  func.func @transform_2(%arg0: i32) -> (i32, i32) {
    %c0_i32 = arith.constant 0 : i32
    %c0_i32_0 = arith.constant 0 : i32
    %c0_i32_1 = arith.constant 0 : i32
    return %c0_i32, %c0_i32_0 : i32, i32
  }
  func.func @transform_3(%arg0: i32) -> (i32, i32) {
    %c0_i32 = arith.constant 0 : i32
    %c0_i32_0 = arith.constant 0 : i32
    %c0_i32_1 = arith.constant 0 : i32
    return %c0_i32, %c0_i32_0 : i32, i32
  }
  func.func @transform_4(%arg0: i32) -> (i32, i32) {
    %c0_i32 = arith.constant 0 : i32
    %c0_i32_0 = arith.constant 0 : i32
    %c0_i32_1 = arith.constant 0 : i32
    return %c0_i32, %c0_i32_0 : i32, i32
  }
  func.func @transform_5(%arg0: i32) -> (i32, i32) {
    %c0_i32 = arith.constant 0 : i32
    %c0_i32_0 = arith.constant 0 : i32
    %c0_i32_1 = arith.constant 0 : i32
    return %c0_i32, %c0_i32_0 : i32, i32
  }
  func.func @transform_6(%arg0: i32) -> (i32, i32) {
    %c0_i32 = arith.constant 0 : i32
    %c0_i32_0 = arith.constant 0 : i32
    return %arg0, %c0_i32 : i32, i32
  }
}

</mosaic_0001>

<llo_original>
// kernel: tpu_custom_call.1
$region0: #{tpu_custom_call.1}
  #allocation0 [shape = 'u32[]', space=smem, size = 0x4, offset = 0x4, fixed_abs, tag = 'smem constant byte address 0x4 - core index']
  #allocation1 [shape = 'u32[144,128]{1,0:T(1,128)}', space=vmem, size = 0x12000, scoped, tag = 'internal scratch']
  %s0 = inlined_call_operand.hbm [shape: f32[8,3904], index: 0, kind: input, shape index: {}]
  %s1 = inlined_call_operand.hbm [shape: bf16[3904,128], index: 1, kind: input, shape index: {}]
  %s2 = inlined_call_operand.hbm [shape: bf16[128,128], index: 2, kind: input, shape index: {}]
  %s3 = inlined_call_operand.hbm [shape: bf16[128,128], index: 3, kind: input, shape index: {}]
  %s4 = inlined_call_operand.hbm [shape: bf16[128,128], index: 4, kind: input, shape index: {}]
  %s5 = inlined_call_operand.vmem [shape: f32[4,128], index: 5, kind: input, shape index: {}]
  %s6 = inlined_call_operand.vmem [shape: f32[8,2], index: 6, kind: output, shape index: {}]
  %s7 = sld [smem:[#allocation0]]
  $region54: #{tpu_custom_call.1} parent=0
    _
  %s9 = ssub.s32 1, %s7
  %s10 = scalar_select 0, %s9, %s7
  $region1: #{tpu_custom_call.1} parent=0
    #allocation2 [shape = 'u8[126976]{0}', space=vmem, size = 0x1f000, scoped, tag = 'input window, operand 0, single buffered']
    #allocation3 [shape = 's32[1]{0}', space=sflag, size = 0x4, scoped, tag = 'scoped memory for tpu_custom_call.1']
    #allocation4 [shape = 'u8[999424]{0}', space=vmem, size = 0xf4000, scoped, tag = 'input window, operand 1, single buffered']
    #allocation5 [shape = 's32[1]{0}', space=sflag, size = 0x4, scoped, tag = 'scoped memory for tpu_custom_call.1']
    #allocation6 [shape = 'u8[32768]{0}', space=vmem, size = 0x8000, scoped, tag = 'input window, operand 2, single buffered']
    #allocation7 [shape = 'u8[32768]{0}', space=vmem, size = 0x8000, scoped, tag = 'input window, operand 3, single buffered']
    #allocation8 [shape = 's32[1]{0}', space=sflag, size = 0x4, scoped, tag = 'scoped memory for tpu_custom_call.1']
    #allocation9 [shape = 'u8[32768]{0}', space=vmem, size = 0x8000, scoped, tag = 'input window, operand 4, single buffered']
    %11 = vsyncpa [#allocation3], 0
    %12 = vsyncpa [#allocation5], 0
    %13 = vsyncpa [#allocation8], 0
    // Predicated region
    $region2: #{tpu_custom_call.1} parent=1 // pred_check
      _
    $region3: #{tpu_custom_call.1} parent=1 // pred_check_branch
      %15 = sbr.rel (0) target = $region5
    $region4: #{tpu_custom_call.1} parent=1 // pred_region
      %s17 = ssub.s32 3968, 3968
      %18 = vsyncadd [#allocation3], %s17
      %s20 = sshll.u32 [#allocation2], 4
      %s21 = int_to_ptr.vmem [resolvable:$true] %s20
      %23 = dma.hbm_to_vmem [thread:$0]  %s0, 3968, %s21, [#allocation3]
    $region5: #{tpu_custom_call.1} parent=1 // pred_fallthru
      _
    // Predicated region
    $region6: #{tpu_custom_call.1} parent=1 // pred_check
      _
    $region7: #{tpu_custom_call.1} parent=1 // pred_check_branch
      %25 = sbr.rel (0) target = $region9
    $region8: #{tpu_custom_call.1} parent=1 // pred_region
      %s27 = ssub.s32 31232, 31232
      %28 = vsyncadd [#allocation5], %s27
      %s29 = sshll.u32 [#allocation4], 4
      %s30 = int_to_ptr.vmem [resolvable:$true] %s29
      %35 = dma.hbm_to_vmem [thread:$0]  %s1, 31232, %s30, [#allocation5], 64, 64, 4
    $region9: #{tpu_custom_call.1} parent=1 // pred_fallthru
      _
    // Predicated region
    $region10: #{tpu_custom_call.1} parent=1 // pred_check
      _
    $region11: #{tpu_custom_call.1} parent=1 // pred_check_branch
      %37 = sbr.rel (0) target = $region13
    $region12: #{tpu_custom_call.1} parent=1 // pred_region
      %s39 = ssub.s32 1024, 1024
      %40 = vsyncadd [#allocation5], %s39
      %s41 = sshll.u32 [#allocation6], 4
      %s42 = int_to_ptr.vmem [resolvable:$true] %s41
      %47 = dma.hbm_to_vmem [thread:$0]  %s2, 1024, %s42, [#allocation5], 64, 64, 4
    $region13: #{tpu_custom_call.1} parent=1 // pred_fallthru
      _
    // Predicated region
    $region14: #{tpu_custom_call.1} parent=1 // pred_check
      _
    $region15: #{tpu_custom_call.1} parent=1 // pred_check_branch
      %49 = sbr.rel (0) target = $region17
    $region16: #{tpu_custom_call.1} parent=1 // pred_region
      %s51 = ssub.s32 1024, 1024
      %52 = vsyncadd [#allocation8], %s51
      %s53 = sshll.u32 [#allocation7], 4
      %s54 = int_to_ptr.vmem [resolvable:$true] %s53
      %59 = dma.hbm_to_vmem [thread:$0]  %s3, 1024, %s54, [#allocation8], 64, 64, 4
    $region17: #{tpu_custom_call.1} parent=1 // pred_fallthru
      _
    // Predicated region
    $region18: #{tpu_custom_call.1} parent=1 // pred_check
      _
    $region19: #{tpu_custom_call.1} parent=1 // pred_check_branch
      %61 = sbr.rel (0) target = $region21
    $region20: #{tpu_custom_call.1} parent=1 // pred_region
      %s63 = ssub.s32 1024, 1024
      %64 = vsyncadd [#allocation8], %s63
      %s65 = sshll.u32 [#allocation9], 4
      %s66 = int_to_ptr.vmem [resolvable:$true] %s65
      %71 = dma.hbm_to_vmem [thread:$0]  %s4, 1024, %s66, [#allocation8], 64, 64, 4
    $region21: #{tpu_custom_call.1} parent=1 // pred_fallthru
      _
    // Predicated region
    $region22: #{tpu_custom_call.1} parent=1 // pred_check
      _
    $region23: #{tpu_custom_call.1} parent=1 // pred_check_branch
      %73 = sbr.rel (0) target = $region25
    $region24: #{tpu_custom_call.1} parent=1 // pred_region
      _
    $region25: #{tpu_custom_call.1} parent=1 // pred_fallthru
      _
    // Predicated region
    $region26: #{tpu_custom_call.1} parent=1 // pred_check
      _
    $region27: #{tpu_custom_call.1} parent=1 // pred_check_branch
      %75 = sbr.rel (0) target = $region29
    $region28: #{tpu_custom_call.1} parent=1 // pred_region
      %76 = dma.done [#allocation3], 3968
    $region29: #{tpu_custom_call.1} parent=1 // pred_fallthru
      _
    // Predicated region
    $region30: #{tpu_custom_call.1} parent=1 // pred_check
      _
    $region31: #{tpu_custom_call.1} parent=1 // pred_check_branch
      %78 = sbr.rel (0) target = $region33
    $region32: #{tpu_custom_call.1} parent=1 // pred_region
      %79 = dma.done [#allocation5], 31232
    $region33: #{tpu_custom_call.1} parent=1 // pred_fallthru
      _
    // Predicated region
    $region34: #{tpu_custom_call.1} parent=1 // pred_check
      _
    $region35: #{tpu_custom_call.1} parent=1 // pred_check_branch
      %81 = sbr.rel (0) target = $region37
    $region36: #{tpu_custom_call.1} parent=1 // pred_region
      %82 = dma.done [#allocation5], 1024
    $region37: #{tpu_custom_call.1} parent=1 // pred_fallthru
      _
    // Predicated region
    $region38: #{tpu_custom_call.1} parent=1 // pred_check
      _
    $region39: #{tpu_custom_call.1} parent=1 // pred_check_branch
      %84 = sbr.rel (0) target = $region41
    $region40: #{tpu_custom_call.1} parent=1 // pred_region
      %85 = dma.done [#allocation8], 1024
    $region41: #{tpu_custom_call.1} parent=1 // pred_fallthru
      _
    // Predicated region
    $region42: #{tpu_custom_call.1} parent=1 // pred_check
      _
    $region43: #{tpu_custom_call.1} parent=1 // pred_check_branch
      %87 = sbr.rel (0) target = $region45
    $region44: #{tpu_custom_call.1} parent=1 // pred_region
      %88 = dma.done [#allocation8], 1024
    $region45: #{tpu_custom_call.1} parent=1 // pred_fallthru
      _
    %v90 = vld [vmem:[%s5] sm:$0xf]
    %v91 = vld [vmem:[#allocation2] sm:$0xff]
    %v92 = vld [vmem:[#allocation2 + $0x8] sm:$0xff]
    %v93 = vld [vmem:[#allocation2 + $0x10] sm:$0xff]
    %v94 = vld [vmem:[#allocation2 + $0x18] sm:$0xff]
    %v95 = vld [vmem:[#allocation2 + $0x20] sm:$0xff]
    %v96 = vld [vmem:[#allocation2 + $0x28] sm:$0xff]
    %v97 = vld [vmem:[#allocation2 + $0x30] sm:$0xff]
    %v98 = vld [vmem:[#allocation2 + $0x38] sm:$0xff]
    %v99 = vpack.c.bf16 %v91, %v91
    %v100 = vpack.c.bf16 %v92, %v92
    %v101 = vpack.c.bf16 %v93, %v93
    %v102 = vpack.c.bf16 %v94, %v94
    %v103 = vpack.c.bf16 %v95, %v95
    %v104 = vpack.c.bf16 %v96, %v96
    %v105 = vpack.c.bf16 %v97, %v97
    %v106 = vpack.c.bf16 %v98, %v98
    %v107 = vld [vmem:[#allocation4] sm:$0xf]
    %v108 = vld [vmem:[#allocation4 + $0x4] sm:$0xf]
    %v109 = vld [vmem:[#allocation4 + $0x8] sm:$0xf]
    %v110 = vld [vmem:[#allocation4 + $0xc] sm:$0xf]
    %v111 = vld [vmem:[#allocation4 + $0x10] sm:$0xf]
    %v112 = vld [vmem:[#allocation4 + $0x14] sm:$0xf]
    %v113 = vld [vmem:[#allocation4 + $0x18] sm:$0xf]
    %v114 = vld [vmem:[#allocation4 + $0x1c] sm:$0xf]
    %v115 = vld [vmem:[#allocation4 + $0x20] sm:$0xf]
    %v116 = vld [vmem:[#allocation4 + $0x24] sm:$0xf]
    %v117 = vld [vmem:[#allocation4 + $0x28] sm:$0xf]
    %v118 = vld [vmem:[#allocation4 + $0x2c] sm:$0xf]
    %v119 = vld [vmem:[#allocation4 + $0x30] sm:$0xf]
    %v120 = vld [vmem:[#allocation4 + $0x34] sm:$0xf]
    %v121 = vld [vmem:[#allocation4 + $0x38] sm:$0xf]
    %v122 = vld [vmem:[#allocation4 + $0x3c] sm:$0xf]
    %v123 = vld [vmem:[#allocation4 + $0x40] sm:$0xf]
    %v124 = vld [vmem:[#allocation4 + $0x44] sm:$0xf]
    %v125 = vld [vmem:[#allocation4 + $0x48] sm:$0xf]
    %v126 = vld [vmem:[#allocation4 + $0x4c] sm:$0xf]
    %v127 = vld [vmem:[#allocation4 + $0x50] sm:$0xf]
    %v128 = vld [vmem:[#allocation4 + $0x54] sm:$0xf]
    %v129 = vld [vmem:[#allocation4 + $0x58] sm:$0xf]
    %v130 = vld [vmem:[#allocation4 + $0x5c] sm:$0xf]
    %v131 = vld [vmem:[#allocation4 + $0x60] sm:$0xf]
    %v132 = vld [vmem:[#allocation4 + $0x64] sm:$0xf]
    %v133 = vld [vmem:[#allocation4 + $0x68] sm:$0xf]
    %v134 = vld [vmem:[#allocation4 + $0x6c] sm:$0xf]
    %v135 = vld [vmem:[#allocation4 + $0x70] sm:$0xf]
    %v136 = vld [vmem:[#allocation4 + $0x74] sm:$0xf]
    %v137 = vld [vmem:[#allocation4 + $0x78] sm:$0xf]
    %v138 = vld [vmem:[#allocation4 + $0x7c] sm:$0xf]
    %v139 = vld [vmem:[#allocation4 + $0x80] sm:$0xf]
    %v140 = vld [vmem:[#allocation4 + $0x84] sm:$0xf]
    %v141 = vld [vmem:[#allocation4 + $0x88] sm:$0xf]
    %v142 = vld [vmem:[#allocation4 + $0x8c] sm:$0xf]
    %v143 = vld [vmem:[#allocation4 + $0x90] sm:$0xf]
    %v144 = vld [vmem:[#allocation4 + $0x94] sm:$0xf]
    %v145 = vld [vmem:[#allocation4 + $0x98] sm:$0xf]
    %v146 = vld [vmem:[#allocation4 + $0x9c] sm:$0xf]
    %v147 = vld [vmem:[#allocation4 + $0xa0] sm:$0xf]
    %v148 = vld [vmem:[#allocation4 + $0xa4] sm:$0xf]
    %v149 = vld [vmem:[#allocation4 + $0xa8] sm:$0xf]
    %v150 = vld [vmem:[#allocation4 + $0xac] sm:$0xf]
    %v151 = vld [vmem:[#allocation4 + $0xb0] sm:$0xf]
    %v152 = vld [vmem:[#allocation4 + $0xb4] sm:$0xf]
    %v153 = vld [vmem:[#allocation4 + $0xb8] sm:$0xf]
    %v154 = vld [vmem:[#allocation4 + $0xbc] sm:$0xf]
    %v155 = vld [vmem:[#allocation4 + $0xc0] sm:$0xf]
    %v156 = vld [vmem:[#allocation4 + $0xc4] sm:$0xf]
    %v157 = vld [vmem:[#allocation4 + $0xc8] sm:$0xf]
    %v158 = vld [vmem:[#allocation4 + $0xcc] sm:$0xf]
    %v159 = vld [vmem:[#allocation4 + $0xd0] sm:$0xf]
    %v160 = vld [vmem:[#allocation4 + $0xd4] sm:$0xf]
    %v161 = vld [vmem:[#allocation4 + $0xd8] sm:$0xf]
    %v162 = vld [vmem:[#allocation4 + $0xdc] sm:$0xf]
    %v163 = vld [vmem:[#allocation4 + $0xe0] sm:$0xf]
    %v164 = vld [vmem:[#allocation4 + $0xe4] sm:$0xf]
    %v165 = vld [vmem:[#allocation4 + $0xe8] sm:$0xf]
    %v166 = vld [vmem:[#allocation4 + $0xec] sm:$0xf]
    %v167 = vld [vmem:[#allocation4 + $0xf0] sm:$0xf]
    %v168 = vld [vmem:[#allocation4 + $0xf4] sm:$0xf]
    %v169 = vld [vmem:[#allocation4 + $0xf8] sm:$0xf]
    %v170 = vld [vmem:[#allocation4 + $0xfc] sm:$0xf]
    %v171 = vld [vmem:[#allocation4 + $0x100] sm:$0xf]
    %v172 = vld [vmem:[#allocation4 + $0x104] sm:$0xf]
    %v173 = vld [vmem:[#allocation4 + $0x108] sm:$0xf]
    %v174 = vld [vmem:[#allocation4 + $0x10c] sm:$0xf]
    %v175 = vld [vmem:[#allocation4 + $0x110] sm:$0xf]
    %v176 = vld [vmem:[#allocation4 + $0x114] sm:$0xf]
    %v177 = vld [vmem:[#allocation4 + $0x118] sm:$0xf]
    %v178 = vld [vmem:[#allocation4 + $0x11c] sm:$0xf]
    %v179 = vld [vmem:[#allocation4 + $0x120] sm:$0xf]
    %v180 = vld [vmem:[#allocation4 + $0x124] sm:$0xf]
    %v181 = vld [vmem:[#allocation4 + $0x128] sm:$0xf]
    %v182 = vld [vmem:[#allocation4 + $0x12c] sm:$0xf]
    %v183 = vld [vmem:[#allocation4 + $0x130] sm:$0xf]
    %v184 = vld [vmem:[#allocation4 + $0x134] sm:$0xf]
    %v185 = vld [vmem:[#allocation4 + $0x138] sm:$0xf]
    %v186 = vld [vmem:[#allocation4 + $0x13c] sm:$0xf]
    %v187 = vld [vmem:[#allocation4 + $0x140] sm:$0xf]
    %v188 = vld [vmem:[#allocation4 + $0x144] sm:$0xf]
    %v189 = vld [vmem:[#allocation4 + $0x148] sm:$0xf]
    %v190 = vld [vmem:[#allocation4 + $0x14c] sm:$0xf]
    %v191 = vld [vmem:[#allocation4 + $0x150] sm:$0xf]
    %v192 = vld [vmem:[#allocation4 + $0x154] sm:$0xf]
    %v193 = vld [vmem:[#allocation4 + $0x158] sm:$0xf]
    %v194 = vld [vmem:[#allocation4 + $0x15c] sm:$0xf]
    %v195 = vld [vmem:[#allocation4 + $0x160] sm:$0xf]
    %v196 = vld [vmem:[#allocation4 + $0x164] sm:$0xf]
    %v197 = vld [vmem:[#allocation4 + $0x168] sm:$0xf]
    %v198 = vld [vmem:[#allocation4 + $0x16c] sm:$0xf]
    %v199 = vld [vmem:[#allocation4 + $0x170] sm:$0xf]
    %v200 = vld [vmem:[#allocation4 + $0x174] sm:$0xf]
    %v201 = vld [vmem:[#allocation4 + $0x178] sm:$0xf]
    %v202 = vld [vmem:[#allocation4 + $0x17c] sm:$0xf]
    %v203 = vld [vmem:[#allocation4 + $0x180] sm:$0xf]
    %v204 = vld [vmem:[#allocation4 + $0x184] sm:$0xf]
    %v205 = vld [vmem:[#allocation4 + $0x188] sm:$0xf]
    %v206 = vld [vmem:[#allocation4 + $0x18c] sm:$0xf]
    %v207 = vld [vmem:[#allocation4 + $0x190] sm:$0xf]
    %v208 = vld [vmem:[#allocation4 + $0x194] sm:$0xf]
    %v209 = vld [vmem:[#allocation4 + $0x198] sm:$0xf]
    %v210 = vld [vmem:[#allocation4 + $0x19c] sm:$0xf]
    %v211 = vld [vmem:[#allocation4 + $0x1a0] sm:$0xf]
    %v212 = vld [vmem:[#allocation4 + $0x1a4] sm:$0xf]
    %v213 = vld [vmem:[#allocation4 + $0x1a8] sm:$0xf]
    %v214 = vld [vmem:[#allocation4 + $0x1ac] sm:$0xf]
    %v215 = vld [vmem:[#allocation4 + $0x1b0] sm:$0xf]
    %v216 = vld [vmem:[#allocation4 + $0x1b4] sm:$0xf]
    %v217 = vld [vmem:[#allocation4 + $0x1b8] sm:$0xf]
    %v218 = vld [vmem:[#allocation4 + $0x1bc] sm:$0xf]
    %v219 = vld [vmem:[#allocation4 + $0x1c0] sm:$0xf]
    %v220 = vld [vmem:[#allocation4 + $0x1c4] sm:$0xf]
    %v221 = vld [vmem:[#allocation4 + $0x1c8] sm:$0xf]
    %v222 = vld [vmem:[#allocation4 + $0x1cc] sm:$0xf]
    %v223 = vld [vmem:[#allocation4 + $0x1d0] sm:$0xf]
    %v224 = vld [vmem:[#allocation4 + $0x1d4] sm:$0xf]
    %v225 = vld [vmem:[#allocation4 + $0x1d8] sm:$0xf]
    %v226 = vld [vmem:[#allocation4 + $0x1dc] sm:$0xf]
    %v227 = vld [vmem:[#allocation4 + $0x1e0] sm:$0xf]
    %v228 = vld [vmem:[#allocation4 + $0x1e4] sm:$0xf]
    %v229 = vld [vmem:[#allocation4 + $0x1e8] sm:$0xf]
    %v230 = vld [vmem:[#allocation4 + $0x1ec] sm:$0xf]
    %v231 = vld [vmem:[#allocation4 + $0x1f0] sm:$0xf]
    %v232 = vld [vmem:[#allocation4 + $0x1f4] sm:$0xf]
    %v233 = vld [vmem:[#allocation4 + $0x1f8] sm:$0xf]
    %v234 = vld [vmem:[#allocation4 + $0x1fc] sm:$0xf]
    %v235 = vld [vmem:[#allocation2 + $0x40] sm:$0xff]
    %v236 = vld [vmem:[#allocation2 + $0x48] sm:$0xff]
    %v237 = vld [vmem:[#allocation2 + $0x50] sm:$0xff]
    %v238 = vld [vmem:[#allocation2 + $0x58] sm:$0xff]
    %v239 = vld [vmem:[#allocation2 + $0x60] sm:$0xff]
    %v240 = vld [vmem:[#allocation2 + $0x68] sm:$0xff]
    %v241 = vld [vmem:[#allocation2 + $0x70] sm:$0xff]
    %v242 = vld [vmem:[#allocation2 + $0x78] sm:$0xff]
    %v243 = vpack.c.bf16 %v235, %v235
    %v244 = vpack.c.bf16 %v236, %v236
    %v245 = vpack.c.bf16 %v237, %v237
    %v246 = vpack.c.bf16 %v238, %v238
    %v247 = vpack.c.bf16 %v239, %v239
    %v248 = vpack.c.bf16 %v240, %v240
    %v249 = vpack.c.bf16 %v241, %v241
    %v250 = vpack.c.bf16 %v242, %v242
    %v251 = vld [vmem:[#allocation4 + $0x200] sm:$0xf]
    %v252 = vld [vmem:[#allocation4 + $0x204] sm:$0xf]
    %v253 = vld [vmem:[#allocation4 + $0x208] sm:$0xf]
    %v254 = vld [vmem:[#allocation4 + $0x20c] sm:$0xf]
    %v255 = vld [vmem:[#allocation4 + $0x210] sm:$0xf]
    %v256 = vld [vmem:[#allocation4 + $0x214] sm:$0xf]
    %v257 = vld [vmem:[#allocation4 + $0x218] sm:$0xf]
    %v258 = vld [vmem:[#allocation4 + $0x21c] sm:$0xf]
    %v259 = vld [vmem:[#allocation4 + $0x220] sm:$0xf]
    %v260 = vld [vmem:[#allocation4 + $0x224] sm:$0xf]
    %v261 = vld [vmem:[#allocation4 + $0x228] sm:$0xf]
    %v262 = vld [vmem:[#allocation4 + $0x22c] sm:$0xf]
    %v263 = vld [vmem:[#allocation4 + $0x230] sm:$0xf]
    %v264 = vld [vmem:[#allocation4 + $0x234] sm:$0xf]
    %v265 = vld [vmem:[#allocation4 + $0x238] sm:$0xf]
    %v266 = vld [vmem:[#allocation4 + $0x23c] sm:$0xf]
    %v267 = vld [vmem:[#allocation4 + $0x240] sm:$0xf]
    %v268 = vld [vmem:[#allocation4 + $0x244] sm:$0xf]
    %v269 = vld [vmem:[#allocation4 + $0x248] sm:$0xf]
    %v270 = vld [vmem:[#allocation4 + $0x24c] sm:$0xf]
    %v271 = vld [vmem:[#allocation4 + $0x250] sm:$0xf]
    %v272 = vld [vmem:[#allocation4 + $0x254] sm:$0xf]
    %v273 = vld [vmem:[#allocation4 + $0x258] sm:$0xf]
    %v274 = vld [vmem:[#allocation4 + $0x25c] sm:$0xf]
    %v275 = vld [vmem:[#allocation4 + $0x260] sm:$0xf]
    %v276 = vld [vmem:[#allocation4 + $0x264] sm:$0xf]
    %v277 = vld [vmem:[#allocation4 + $0x268] sm:$0xf]
    %v278 = vld [vmem:[#allocation4 + $0x26c] sm:$0xf]
    %v279 = vld [vmem:[#allocation4 + $0x270] sm:$0xf]
    %v280 = vld [vmem:[#allocation4 + $0x274] sm:$0xf]
    %v281 = vld [vmem:[#allocation4 + $0x278] sm:$0xf]
    %v282 = vld [vmem:[#allocation4 + $0x27c] sm:$0xf]
    %v283 = vld [vmem:[#allocation4 + $0x280] sm:$0xf]
    %v284 = vld [vmem:[#allocation4 + $0x284] sm:$0xf]
    %v285 = vld [vmem:[#allocation4 + $0x288] sm:$0xf]
    %v286 = vld [vmem:[#allocation4 + $0x28c] sm:$0xf]
    %v287 = vld [vmem:[#allocation4 + $0x290] sm:$0xf]
    %v288 = vld [vmem:[#allocation4 + $0x294] sm:$0xf]
    %v289 = vld [vmem:[#allocation4 + $0x298] sm:$0xf]
    %v290 = vld [vmem:[#allocation4 + $0x29c] sm:$0xf]
    %v291 = vld [vmem:[#allocation4 + $0x2a0] sm:$0xf]
    %v292 = vld [vmem:[#allocation4 + $0x2a4] sm:$0xf]
    %v293 = vld [vmem:[#allocation4 + $0x2a8] sm:$0xf]
    %v294 = vld [vmem:[#allocation4 + $0x2ac] sm:$0xf]
    %v295 = vld [vmem:[#allocation4 + $0x2b0] sm:$0xf]
    %v296 = vld [vmem:[#allocation4 + $0x2b4] sm:$0xf]
    %v297 = vld [vmem:[#allocation4 + $0x2b8] sm:$0xf]
    %v298 = vld [vmem:[#allocation4 + $0x2bc] sm:$0xf]
    %v299 = vld [vmem:[#allocation4 + $0x2c0] sm:$0xf]
    %v300 = vld [vmem:[#allocation4 + $0x2c4] sm:$0xf]
    %v301 = vld [vmem:[#allocation4 + $0x2c8] sm:$0xf]
    %v302 = vld [vmem:[#allocation4 + $0x2cc] sm:$0xf]
    %v303 = vld [vmem:[#allocation4 + $0x2d0] sm:$0xf]
    %v304 = vld [vmem:[#allocation4 + $0x2d4] sm:$0xf]
    %v305 = vld [vmem:[#allocation4 + $0x2d8] sm:$0xf]
    %v306 = vld [vmem:[#allocation4 + $0x2dc] sm:$0xf]
    %v307 = vld [vmem:[#allocation4 + $0x2e0] sm:$0xf]
    %v308 = vld [vmem:[#allocation4 + $0x2e4] sm:$0xf]
    %v309 = vld [vmem:[#allocation4 + $0x2e8] sm:$0xf]
    %v310 = vld [vmem:[#allocation4 + $0x2ec] sm:$0xf]
    %v311 = vld [vmem:[#allocation4 + $0x2f0] sm:$0xf]
    %v312 = vld [vmem:[#allocation4 + $0x2f4] sm:$0xf]
    %v313 = vld [vmem:[#allocation4 + $0x2f8] sm:$0xf]
    %v314 = vld [vmem:[#allocation4 + $0x2fc] sm:$0xf]
    %v315 = vld [vmem:[#allocation4 + $0x300] sm:$0xf]
    %v316 = vld [vmem:[#allocation4 + $0x304] sm:$0xf]
    %v317 = vld [vmem:[#allocation4 + $0x308] sm:$0xf]
    %v318 = vld [vmem:[#allocation4 + $0x30c] sm:$0xf]
    %v319 = vld [vmem:[#allocation4 + $0x310] sm:$0xf]
    %v320 = vld [vmem:[#allocation4 + $0x314] sm:$0xf]
    %v321 = vld [vmem:[#allocation4 + $0x318] sm:$0xf]
    %v322 = vld [vmem:[#allocation4 + $0x31c] sm:$0xf]
    %v323 = vld [vmem:[#allocation4 + $0x320] sm:$0xf]
    %v324 = vld [vmem:[#allocation4 + $0x324] sm:$0xf]
    %v325 = vld [vmem:[#allocation4 + $0x328] sm:$0xf]
    %v326 = vld [vmem:[#allocation4 + $0x32c] sm:$0xf]
    %v327 = vld [vmem:[#allocation4 + $0x330] sm:$0xf]
    %v328 = vld [vmem:[#allocation4 + $0x334] sm:$0xf]
    %v329 = vld [vmem:[#allocation4 + $0x338] sm:$0xf]
    %v330 = vld [vmem:[#allocation4 + $0x33c] sm:$0xf]
    %v331 = vld [vmem:[#allocation4 + $0x340] sm:$0xf]
    %v332 = vld [vmem:[#allocation4 + $0x344] sm:$0xf]
    %v333 = vld [vmem:[#allocation4 + $0x348] sm:$0xf]
    %v334 = vld [vmem:[#allocation4 + $0x34c] sm:$0xf]
    %v335 = vld [vmem:[#allocation4 + $0x350] sm:$0xf]
    %v336 = vld [vmem:[#allocation4 + $0x354] sm:$0xf]
    %v337 = vld [vmem:[#allocation4 + $0x358] sm:$0xf]
    %v338 = vld [vmem:[#allocation4 + $0x35c] sm:$0xf]
    %v339 = vld [vmem:[#allocation4 + $0x360] sm:$0xf]
    %v340 = vld [vmem:[#allocation4 + $0x364] sm:$0xf]
    %v341 = vld [vmem:[#allocation4 + $0x368] sm:$0xf]
    %v342 = vld [vmem:[#allocation4 + $0x36c] sm:$0xf]
    %v343 = vld [vmem:[#allocation4 + $0x370] sm:$0xf]
    %v344 = vld [vmem:[#allocation4 + $0x374] sm:$0xf]
    %v345 = vld [vmem:[#allocation4 + $0x378] sm:$0xf]
    %v346 = vld [vmem:[#allocation4 + $0x37c] sm:$0xf]
    %v347 = vld [vmem:[#allocation4 + $0x380] sm:$0xf]
    %v348 = vld [vmem:[#allocation4 + $0x384] sm:$0xf]
    %v349 = vld [vmem:[#allocation4 + $0x388] sm:$0xf]
    %v350 = vld [vmem:[#allocation4 + $0x38c] sm:$0xf]
    %v351 = vld [vmem:[#allocation4 + $0x390] sm:$0xf]
    %v352 = vld [vmem:[#allocation4 + $0x394] sm:$0xf]
    %v353 = vld [vmem:[#allocation4 + $0x398] sm:$0xf]
    %v354 = vld [vmem:[#allocation4 + $0x39c] sm:$0xf]
    %v355 = vld [vmem:[#allocation4 + $0x3a0] sm:$0xf]
    %v356 = vld [vmem:[#allocation4 + $0x3a4] sm:$0xf]
    %v357 = vld [vmem:[#allocation4 + $0x3a8] sm:$0xf]
    %v358 = vld [vmem:[#allocation4 + $0x3ac] sm:$0xf]
    %v359 = vld [vmem:[#allocation4 + $0x3b0] sm:$0xf]
    %v360 = vld [vmem:[#allocation4 + $0x3b4] sm:$0xf]
    %v361 = vld [vmem:[#allocation4 + $0x3b8] sm:$0xf]
    %v362 = vld [vmem:[#allocation4 + $0x3bc] sm:$0xf]
    %v363 = vld [vmem:[#allocation4 + $0x3c0] sm:$0xf]
    %v364 = vld [vmem:[#allocation4 + $0x3c4] sm:$0xf]
    %v365 = vld [vmem:[#allocation4 + $0x3c8] sm:$0xf]
    %v366 = vld [vmem:[#allocation4 + $0x3cc] sm:$0xf]
    %v367 = vld [vmem:[#allocation4 + $0x3d0] sm:$0xf]
    %v368 = vld [vmem:[#allocation4 + $0x3d4] sm:$0xf]
    %v369 = vld [vmem:[#allocation4 + $0x3d8] sm:$0xf]
    %v370 = vld [vmem:[#allocation4 + $0x3dc] sm:$0xf]
    %v371 = vld [vmem:[#allocation4 + $0x3e0] sm:$0xf]
    %v372 = vld [vmem:[#allocation4 + $0x3e4] sm:$0xf]
    %v373 = vld [vmem:[#allocation4 + $0x3e8] sm:$0xf]
    %v374 = vld [vmem:[#allocation4 + $0x3ec] sm:$0xf]
    %v375 = vld [vmem:[#allocation4 + $0x3f0] sm:$0xf]
    %v376 = vld [vmem:[#allocation4 + $0x3f4] sm:$0xf]
    %v377 = vld [vmem:[#allocation4 + $0x3f8] sm:$0xf]
    %v378 = vld [vmem:[#allocation4 + $0x3fc] sm:$0xf]
    %v507 = vunpack.c.l.b16 %v251
    %v508 = vunpack.c.l.b16 %v252
    %v509 = vunpack.c.l.b16 %v253
    %v510 = vunpack.c.l.b16 %v254
    %v511 = vunpack.c.l.b16 %v255
    %v512 = vunpack.c.l.b16 %v256
    %v513 = vunpack.c.l.b16 %v257
    %v514 = vunpack.c.l.b16 %v258
    %v515 = vunpack.c.l.b16 %v259
    %v516 = vunpack.c.l.b16 %v260
    %v517 = vunpack.c.l.b16 %v261
    %v518 = vunpack.c.l.b16 %v262
    %v519 = vunpack.c.l.b16 %v263
    %v520 = vunpack.c.l.b16 %v264
    %v521 = vunpack.c.l.b16 %v265
    %v522 = vunpack.c.l.b16 %v266
    %v523 = vunpack.c.l.b16 %v267
    %v524 = vunpack.c.l.b16 %v268
    %v525 = vunpack.c.l.b16 %v269
    %v526 = vunpack.c.l.b16 %v270
    %v527 = vunpack.c.l.b16 %v271
    %v528 = vunpack.c.l.b16 %v272
    %v529 = vunpack.c.l.b16 %v273
    %v530 = vunpack.c.l.b16 %v274
    %v531 = vunpack.c.l.b16 %v275
    %v532 = vunpack.c.l.b16 %v276
    %v533 = vunpack.c.l.b16 %v277
    %v534 = vunpack.c.l.b16 %v278
    %v535 = vunpack.c.l.b16 %v279
    %v536 = vunpack.c.l.b16 %v280
    %v537 = vunpack.c.l.b16 %v281
    %v538 = vunpack.c.l.b16 %v282
    %v539 = vunpack.c.l.b16 %v283
    %v540 = vunpack.c.l.b16 %v284
    %v541 = vunpack.c.l.b16 %v285
    %v542 = vunpack.c.l.b16 %v286
    %v543 = vunpack.c.l.b16 %v287
    %v544 = vunpack.c.l.b16 %v288
    %v545 = vunpack.c.l.b16 %v289
    %v546 = vunpack.c.l.b16 %v290
    %v547 = vunpack.c.l.b16 %v291
    %v548 = vunpack.c.l.b16 %v292
    %v549 = vunpack.c.l.b16 %v293
    %v550 = vunpack.c.l.b16 %v294
    %v551 = vunpack.c.l.b16 %v295
    %v552 = vunpack.c.l.b16 %v296
    %v553 = vunpack.c.l.b16 %v297
    %v554 = vunpack.c.l.b16 %v298
    %v555 = vunpack.c.l.b16 %v299
    %v556 = vunpack.c.l.b16 %v300
    %v557 = vunpack.c.l.b16 %v301
    %v558 = vunpack.c.l.b16 %v302
    %v559 = vunpack.c.l.b16 %v303
    %v560 = vunpack.c.l.b16 %v304
    %v561 = vunpack.c.l.b16 %v305
    %v562 = vunpack.c.l.b16 %v306
    %v563 = vunpack.c.l.b16 %v307
    %v564 = vunpack.c.l.b16 %v308
    %v565 = vunpack.c.l.b16 %v309
    %v566 = vunpack.c.l.b16 %v310
    %v567 = vunpack.c.l.b16 %v311
    %v568 = vunpack.c.l.b16 %v312
    %v569 = vunpack.c.l.b16 %v313
    %v570 = vunpack.c.l.b16 %v314
    %v571 = vunpack.c.l.b16 %v315
    %v572 = vunpack.c.l.b16 %v316
    %v573 = vunpack.c.l.b16 %v317
    %v574 = vunpack.c.l.b16 %v318
    %v575 = vunpack.c.l.b16 %v319
    %v576 = vunpack.c.l.b16 %v320
    %v577 = vunpack.c.l.b16 %v321
    %v578 = vunpack.c.l.b16 %v322
    %v579 = vunpack.c.l.b16 %v323
    %v580 = vunpack.c.l.b16 %v324
    %v581 = vunpack.c.l.b16 %v325
    %v582 = vunpack.c.l.b16 %v326
    %v583 = vunpack.c.l.b16 %v327
    %v584 = vunpack.c.l.b16 %v328
    %v585 = vunpack.c.l.b16 %v329
    %v586 = vunpack.c.l.b16 %v330
    %v587 = vunpack.c.l.b16 %v331
    %v588 = vunpack.c.l.b16 %v332
    %v589 = vunpack.c.l.b16 %v333
    %v590 = vunpack.c.l.b16 %v334
    %v591 = vunpack.c.l.b16 %v335
    %v592 = vunpack.c.l.b16 %v336
    %v593 = vunpack.c.l.b16 %v337
    %v594 = vunpack.c.l.b16 %v338
    %v595 = vunpack.c.l.b16 %v339
    %v596 = vunpack.c.l.b16 %v340
    %v597 = vunpack.c.l.b16 %v341
    %v598 = vunpack.c.l.b16 %v342
    %v599 = vunpack.c.l.b16 %v343
    %v600 = vunpack.c.l.b16 %v344
    %v601 = vunpack.c.l.b16 %v345
    %v602 = vunpack.c.l.b16 %v346
    %v603 = vunpack.c.l.b16 %v347
    %v604 = vunpack.c.l.b16 %v348
    %v605 = vunpack.c.l.b16 %v349
    %v606 = vunpack.c.l.b16 %v350
    %v607 = vunpack.c.l.b16 %v351
    %v608 = vunpack.c.l.b16 %v352
    %v609 = vunpack.c.l.b16 %v353
    %v610 = vunpack.c.l.b16 %v354
    %v611 = vunpack.c.l.b16 %v355
    %v612 = vunpack.c.l.b16 %v356
    %v613 = vunpack.c.l.b16 %v357
    %v614 = vunpack.c.l.b16 %v358
    %v615 = vunpack.c.l.b16 %v359
    %v616 = vunpack.c.l.b16 %v360
    %v617 = vunpack.c.l.b16 %v361
    %v618 = vunpack.c.l.b16 %v362
    %v619 = vunpack.c.l.b16 %v363
    %v620 = vunpack.c.l.b16 %v364
    %v621 = vunpack.c.l.b16 %v365
    %v622 = vunpack.c.l.b16 %v366
    %v623 = vunpack.c.l.b16 %v367
    %v624 = vunpack.c.l.b16 %v368
    %v625 = vunpack.c.l.b16 %v369
    %v626 = vunpack.c.l.b16 %v370
    %v627 = vunpack.c.l.b16 %v371
    %v628 = vunpack.c.l.b16 %v372
    %v629 = vunpack.c.l.b16 %v373
    %v630 = vunpack.c.l.b16 %v374
    %v631 = vunpack.c.l.b16 %v375
    %v632 = vunpack.c.l.b16 %v376
    %v633 = vunpack.c.l.b16 %v377
    %v634 = vunpack.c.l.b16 %v378
    %v635 = vpack.c.b16 %v508, %v507
    %v636 = vpack.c.b16 %v510, %v509
    %v637 = vpack.c.b16 %v512, %v511
    %v638 = vpack.c.b16 %v514, %v513
    %v639 = vpack.c.b16 %v516, %v515
    %v640 = vpack.c.b16 %v518, %v517
    %v641 = vpack.c.b16 %v520, %v519
    %v642 = vpack.c.b16 %v522, %v521
    %v643 = vpack.c.b16 %v524, %v523
    %v644 = vpack.c.b16 %v526, %v525
    %v645 = vpack.c.b16 %v528, %v527
    %v646 = vpack.c.b16 %v530, %v529
    %v647 = vpack.c.b16 %v532, %v531
    %v648 = vpack.c.b16 %v534, %v533
    %v649 = vpack.c.b16 %v536, %v535
    %v650 = vpack.c.b16 %v538, %v537
    %v651 = vpack.c.b16 %v540, %v539
    %v652 = vpack.c.b16 %v542, %v541
    %v653 = vpack.c.b16 %v544, %v543
    %v654 = vpack.c.b16 %v546, %v545
    %v655 = vpack.c.b16 %v548, %v547
    %v656 = vpack.c.b16 %v550, %v549
    %v657 = vpack.c.b16 %v552, %v551
    %v658 = vpack.c.b16 %v554, %v553
    %v659 = vpack.c.b16 %v556, %v555
    %v660 = vpack.c.b16 %v558, %v557
    %v661 = vpack.c.b16 %v560, %v559
    %v662 = vpack.c.b16 %v562, %v561
    %v663 = vpack.c.b16 %v564, %v563
    %v664 = vpack.c.b16 %v566, %v565
    %v665 = vpack.c.b16 %v568, %v567
    %v666 = vpack.c.b16 %v570, %v569
    %v667 = vpack.c.b16 %v572, %v571
    %v668 = vpack.c.b16 %v574, %v573
    %v669 = vpack.c.b16 %v576, %v575
    %v670 = vpack.c.b16 %v578, %v577
    %v671 = vpack.c.b16 %v580, %v579
    %v672 = vpack.c.b16 %v582, %v581
    %v673 = vpack.c.b16 %v584, %v583
    %v674 = vpack.c.b16 %v586, %v585
    %v675 = vpack.c.b16 %v588, %v587
    %v676 = vpack.c.b16 %v590, %v589
    %v677 = vpack.c.b16 %v592, %v591
    %v678 = vpack.c.b16 %v594, %v593
    %v679 = vpack.c.b16 %v596, %v595
    %v680 = vpack.c.b16 %v598, %v597
    %v681 = vpack.c.b16 %v600, %v599
    %v682 = vpack.c.b16 %v602, %v601
    %v683 = vpack.c.b16 %v604, %v603
    %v684 = vpack.c.b16 %v606, %v605
    %v685 = vpack.c.b16 %v608, %v607
    %v686 = vpack.c.b16 %v610, %v609
    %v687 = vpack.c.b16 %v612, %v611
    %v688 = vpack.c.b16 %v614, %v613
    %v689 = vpack.c.b16 %v616, %v615
    %v690 = vpack.c.b16 %v618, %v617
    %v691 = vpack.c.b16 %v620, %v619
    %v692 = vpack.c.b16 %v622, %v621
    %v693 = vpack.c.b16 %v624, %v623
    %v694 = vpack.c.b16 %v626, %v625
    %v695 = vpack.c.b16 %v628, %v627
    %v696 = vpack.c.b16 %v630, %v629
    %v697 = vpack.c.b16 %v632, %v631
    %v698 = vpack.c.b16 %v634, %v633
    %763 = vmatprep.subr.bf16.mxu0 0
    %764 = vmatpush1.bf16.msra.mxu0 %v635
    %765 = vmatprep.subr.bf16.mxu0 0
    %766 = vmatpush1.bf16.msra.mxu0 %v636
    %767 = vmatprep.subr.bf16.mxu0 0
    %768 = vmatpush1.bf16.msra.mxu0 %v637
    %769 = vmatprep.subr.bf16.mxu0 0
    %770 = vmatpush1.bf16.msra.mxu0 %v638
    %771 = vmatprep.subr.bf16.mxu0 0
    %772 = vmatpush1.bf16.msra.mxu0 %v639
    %773 = vmatprep.subr.bf16.mxu0 0
    %774 = vmatpush1.bf16.msra.mxu0 %v640
    %775 = vmatprep.subr.bf16.mxu0 0
    %776 = vmatpush1.bf16.msra.mxu0 %v641
    %777 = vmatprep.subr.bf16.mxu0 0
    %778 = vmatpush1.bf16.msra.mxu0 %v642
    %779 = vmatprep.subr.bf16.mxu0 0
    %780 = vmatpush1.bf16.msra.mxu0 %v643
    %781 = vmatprep.subr.bf16.mxu0 0
    %782 = vmatpush1.bf16.msra.mxu0 %v644
    %783 = vmatprep.subr.bf16.mxu0 0
    %784 = vmatpush1.bf16.msra.mxu0 %v645
    %785 = vmatprep.subr.bf16.mxu0 0
    %786 = vmatpush1.bf16.msra.mxu0 %v646
    %787 = vmatprep.subr.bf16.mxu0 0
    %788 = vmatpush1.bf16.msra.mxu0 %v647
    %789 = vmatprep.subr.bf16.mxu0 0
    %790 = vmatpush1.bf16.msra.mxu0 %v648
    %791 = vmatprep.subr.bf16.mxu0 0
    %792 = vmatpush1.bf16.msra.mxu0 %v649
    %793 = vmatprep.subr.bf16.mxu0 0
    %794 = vmatpush1.bf16.msra.mxu0 %v650
    %795 = vmatprep.mubr.bf16.mxu0 %v244
    %796 = vmatmul.mubr.bf16.gmra.mrb[0].mxu0 %v243
    %v797 = vpop.f32.mrb[0].mxu0
    %v798 = vadd.f32 0.0, %v797
    %v799 = vpop.f32.mrb[0].mxu0
    %v800 = vpop.f32.mrb[0].mxu0
    %v801 = vpop.f32.mrb[0].mxu0
    %802 = vdwg.mxu0
    %803 = vmatprep.subr.bf16.mxu0 0
    %804 = vmatpush1.bf16.msra.mxu0 %v651
    %805 = vmatprep.subr.bf16.mxu0 0
    %806 = vmatpush1.bf16.msra.mxu0 %v652
    %807 = vmatprep.subr.bf16.mxu0 0
    %808 = vmatpush1.bf16.msra.mxu0 %v653
    %809 = vmatprep.subr.bf16.mxu0 0
    %810 = vmatpush1.bf16.msra.mxu0 %v654
    %811 = vmatprep.subr.bf16.mxu0 0
    %812 = vmatpush1.bf16.msra.mxu0 %v655
    %813 = vmatprep.subr.bf16.mxu0 0
    %814 = vmatpush1.bf16.msra.mxu0 %v656
    %815 = vmatprep.subr.bf16.mxu0 0
    %816 = vmatpush1.bf16.msra.mxu0 %v657
    %817 = vmatprep.subr.bf16.mxu0 0
    %818 = vmatpush1.bf16.msra.mxu0 %v658
    %819 = vmatprep.subr.bf16.mxu0 0
    %820 = vmatpush1.bf16.msra.mxu0 %v659
    %821 = vmatprep.subr.bf16.mxu0 0
    %822 = vmatpush1.bf16.msra.mxu0 %v660
    %823 = vmatprep.subr.bf16.mxu0 0
    %824 = vmatpush1.bf16.msra.mxu0 %v661
    %825 = vmatprep.subr.bf16.mxu0 0
    %826 = vmatpush1.bf16.msra.mxu0 %v662
    %827 = vmatprep.subr.bf16.mxu0 0
    %828 = vmatpush1.bf16.msra.mxu0 %v663
    %829 = vmatprep.subr.bf16.mxu0 0
    %830 = vmatpush1.bf16.msra.mxu0 %v664
    %831 = vmatprep.subr.bf16.mxu0 0
    %832 = vmatpush1.bf16.msra.mxu0 %v665
    %833 = vmatprep.subr.bf16.mxu0 0
    %834 = vmatpush1.bf16.msra.mxu0 %v666
    %835 = vmatprep.mubr.bf16.mxu0 %v246
    %836 = vmatmul.mubr.bf16.gmra.mrb[0].mxu0 %v245
    %v837 = vpop.f32.mrb[0].mxu0
    %v838 = vadd.f32 %v798, %v837
    %v839 = vpop.f32.mrb[0].mxu0
    %v840 = vpop.f32.mrb[0].mxu0
    %v841 = vpop.f32.mrb[0].mxu0
    %842 = vdwg.mxu0
    %843 = vmatprep.subr.bf16.mxu0 0
    %844 = vmatpush1.bf16.msra.mxu0 %v667
    %845 = vmatprep.subr.bf16.mxu0 0
    %846 = vmatpush1.bf16.msra.mxu0 %v668
    %847 = vmatprep.subr.bf16.mxu0 0
    %848 = vmatpush1.bf16.msra.mxu0 %v669
    %849 = vmatprep.subr.bf16.mxu0 0
    %850 = vmatpush1.bf16.msra.mxu0 %v670
    %851 = vmatprep.subr.bf16.mxu0 0
    %852 = vmatpush1.bf16.msra.mxu0 %v671
    %853 = vmatprep.subr.bf16.mxu0 0
    %854 = vmatpush1.bf16.msra.mxu0 %v672
    %855 = vmatprep.subr.bf16.mxu0 0
    %856 = vmatpush1.bf16.msra.mxu0 %v673
    %857 = vmatprep.subr.bf16.mxu0 0
    %858 = vmatpush1.bf16.msra.mxu0 %v674
    %859 = vmatprep.subr.bf16.mxu0 0
    %860 = vmatpush1.bf16.msra.mxu0 %v675
    %861 = vmatprep.subr.bf16.mxu0 0
    %862 = vmatpush1.bf16.msra.mxu0 %v676
    %863 = vmatprep.subr.bf16.mxu0 0
    %864 = vmatpush1.bf16.msra.mxu0 %v677
    %865 = vmatprep.subr.bf16.mxu0 0
    %866 = vmatpush1.bf16.msra.mxu0 %v678
    %867 = vmatprep.subr.bf16.mxu0 0
    %868 = vmatpush1.bf16.msra.mxu0 %v679
    %869 = vmatprep.subr.bf16.mxu0 0
    %870 = vmatpush1.bf16.msra.mxu0 %v680
    %871 = vmatprep.subr.bf16.mxu0 0
    %872 = vmatpush1.bf16.msra.mxu0 %v681
    %873 = vmatprep.subr.bf16.mxu0 0
    %874 = vmatpush1.bf16.msra.mxu0 %v682
    %875 = vmatprep.mubr.bf16.mxu0 %v248
    %876 = vmatmul.mubr.bf16.gmra.mrb[0].mxu0 %v247
    %v877 = vpop.f32.mrb[0].mxu0
    %v878 = vadd.f32 %v838, %v877
    %v879 = vpop.f32.mrb[0].mxu0
    %v880 = vpop.f32.mrb[0].mxu0
    %v881 = vpop.f32.mrb[0].mxu0
    %882 = vdwg.mxu0
    %883 = vmatprep.subr.bf16.mxu0 0
    %884 = vmatpush1.bf16.msra.mxu0 %v683
    %885 = vmatprep.subr.bf16.mxu0 0
    %886 = vmatpush1.bf16.msra.mxu0 %v684
    %887 = vmatprep.subr.bf16.mxu0 0
    %888 = vmatpush1.bf16.msra.mxu0 %v685
    %889 = vmatprep.subr.bf16.mxu0 0
    %890 = vmatpush1.bf16.msra.mxu0 %v686
    %891 = vmatprep.subr.bf16.mxu0 0
    %892 = vmatpush1.bf16.msra.mxu0 %v687
    %893 = vmatprep.subr.bf16.mxu0 0
    %894 = vmatpush1.bf16.msra.mxu0 %v688
    %895 = vmatprep.subr.bf16.mxu0 0
    %896 = vmatpush1.bf16.msra.mxu0 %v689
    %897 = vmatprep.subr.bf16.mxu0 0
    %898 = vmatpush1.bf16.msra.mxu0 %v690
    %899 = vmatprep.subr.bf16.mxu0 0
    %900 = vmatpush1.bf16.msra.mxu0 %v691
    %901 = vmatprep.subr.bf16.mxu0 0
    %902 = vmatpush1.bf16.msra.mxu0 %v692
    %903 = vmatprep.subr.bf16.mxu0 0
    %904 = vmatpush1.bf16.msra.mxu0 %v693
    %905 = vmatprep.subr.bf16.mxu0 0
    %906 = vmatpush1.bf16.msra.mxu0 %v694
    %907 = vmatprep.subr.bf16.mxu0 0
    %908 = vmatpush1.bf16.msra.mxu0 %v695
    %909 = vmatprep.subr.bf16.mxu0 0
    %910 = vmatpush1.bf16.msra.mxu0 %v696
    %911 = vmatprep.subr.bf16.mxu0 0
    %912 = vmatpush1.bf16.msra.mxu0 %v697
    %913 = vmatprep.subr.bf16.mxu0 0
    %914 = vmatpush1.bf16.msra.mxu0 %v698
    %915 = vmatprep.mubr.bf16.mxu0 %v250
    %916 = vmatmul.mubr.bf16.gmra.mrb[0].mxu0 %v249
    %v917 = vpop.f32.mrb[0].mxu0
    %v918 = vadd.f32 %v878, %v917
    %v919 = vpop.f32.mrb[0].mxu0
    %v920 = vpop.f32.mrb[0].mxu0
    %v921 = vpop.f32.mrb[0].mxu0
    %922 = vdwg.mxu0
    %v1051 = vunpack.c.l.b16 %v107
    %v1052 = vunpack.c.l.b16 %v108
    %v1053 = vunpack.c.l.b16 %v109
    %v1054 = vunpack.c.l.b16 %v110
    %v1055 = vunpack.c.l.b16 %v111
    %v1056 = vunpack.c.l.b16 %v112
    %v1057 = vunpack.c.l.b16 %v113
    %v1058 = vunpack.c.l.b16 %v114
    %v1059 = vunpack.c.l.b16 %v115
    %v1060 = vunpack.c.l.b16 %v116
    %v1061 = vunpack.c.l.b16 %v117
    %v1062 = vunpack.c.l.b16 %v118
    %v1063 = vunpack.c.l.b16 %v119
    %v1064 = vunpack.c.l.b16 %v120
    %v1065 = vunpack.c.l.b16 %v121
    %v1066 = vunpack.c.l.b16 %v122
    %v1067 = vunpack.c.l.b16 %v123
    %v1068 = vunpack.c.l.b16 %v124
    %v1069 = vunpack.c.l.b16 %v125
    %v1070 = vunpack.c.l.b16 %v126
    %v1071 = vunpack.c.l.b16 %v127
    %v1072 = vunpack.c.l.b16 %v128
    %v1073 = vunpack.c.l.b16 %v129
    %v1074 = vunpack.c.l.b16 %v130
    %v1075 = vunpack.c.l.b16 %v131
    %v1076 = vunpack.c.l.b16 %v132
    %v1077 = vunpack.c.l.b16 %v133
    %v1078 = vunpack.c.l.b16 %v134
    %v1079 = vunpack.c.l.b16 %v135
    %v1080 = vunpack.c.l.b16 %v136
    %v1081 = vunpack.c.l.b16 %v137
    %v1082 = vunpack.c.l.b16 %v138
    %v1083 = vunpack.c.l.b16 %v139
    %v1084 = vunpack.c.l.b16 %v140
    %v1085 = vunpack.c.l.b16 %v141
    %v1086 = vunpack.c.l.b16 %v142
    %v1087 = vunpack.c.l.b16 %v143
    %v1088 = vunpack.c.l.b16 %v144
    %v1089 = vunpack.c.l.b16 %v145
    %v1090 = vunpack.c.l.b16 %v146
    %v1091 = vunpack.c.l.b16 %v147
    %v1092 = vunpack.c.l.b16 %v148
    %v1093 = vunpack.c.l.b16 %v149
    %v1094 = vunpack.c.l.b16 %v150
    %v1095 = vunpack.c.l.b16 %v151
    %v1096 = vunpack.c.l.b16 %v152
    %v1097 = vunpack.c.l.b16 %v153
    %v1098 = vunpack.c.l.b16 %v154
    %v1099 = vunpack.c.l.b16 %v155
    %v1100 = vunpack.c.l.b16 %v156
    %v1101 = vunpack.c.l.b16 %v157
    %v1102 = vunpack.c.l.b16 %v158
    %v1103 = vunpack.c.l.b16 %v159
    %v1104 = vunpack.c.l.b16 %v160
    %v1105 = vunpack.c.l.b16 %v161
    %v1106 = vunpack.c.l.b16 %v162
    %v1107 = vunpack.c.l.b16 %v163
    %v1108 = vunpack.c.l.b16 %v164
    %v1109 = vunpack.c.l.b16 %v165
    %v1110 = vunpack.c.l.b16 %v166
    %v1111 = vunpack.c.l.b16 %v167
    %v1112 = vunpack.c.l.b16 %v168
    %v1113 = vunpack.c.l.b16 %v169
    %v1114 = vunpack.c.l.b16 %v170
    %v1115 = vunpack.c.l.b16 %v171
    %v1116 = vunpack.c.l.b16 %v172
    %v1117 = vunpack.c.l.b16 %v173
    %v1118 = vunpack.c.l.b16 %v174
    %v1119 = vunpack.c.l.b16 %v175
    %v1120 = vunpack.c.l.b16 %v176
    %v1121 = vunpack.c.l.b16 %v177
    %v1122 = vunpack.c.l.b16 %v178
    %v1123 = vunpack.c.l.b16 %v179
    %v1124 = vunpack.c.l.b16 %v180
    %v1125 = vunpack.c.l.b16 %v181
    %v1126 = vunpack.c.l.b16 %v182
    %v1127 = vunpack.c.l.b16 %v183
    %v1128 = vunpack.c.l.b16 %v184
    %v1129 = vunpack.c.l.b16 %v185
    %v1130 = vunpack.c.l.b16 %v186
    %v1131 = vunpack.c.l.b16 %v187
    %v1132 = vunpack.c.l.b16 %v188
    %v1133 = vunpack.c.l.b16 %v189
    %v1134 = vunpack.c.l.b16 %v190
    %v1135 = vunpack.c.l.b16 %v191
    %v1136 = vunpack.c.l.b16 %v192
    %v1137 = vunpack.c.l.b16 %v193
    %v1138 = vunpack.c.l.b16 %v194
    %v1139 = vunpack.c.l.b16 %v195
    %v1140 = vunpack.c.l.b16 %v196
    %v1141 = vunpack.c.l.b16 %v197
    %v1142 = vunpack.c.l.b16 %v198
    %v1143 = vunpack.c.l.b16 %v199
    %v1144 = vunpack.c.l.b16 %v200
    %v1145 = vunpack.c.l.b16 %v201
    %v1146 = vunpack.c.l.b16 %v202
    %v1147 = vunpack.c.l.b16 %v203
    %v1148 = vunpack.c.l.b16 %v204
    %v1149 = vunpack.c.l.b16 %v205
    %v1150 = vunpack.c.l.b16 %v206
    %v1151 = vunpack.c.l.b16 %v207
    %v1152 = vunpack.c.l.b16 %v208
    %v1153 = vunpack.c.l.b16 %v209
    %v1154 = vunpack.c.l.b16 %v210
    %v1155 = vunpack.c.l.b16 %v211
    %v1156 = vunpack.c.l.b16 %v212
    %v1157 = vunpack.c.l.b16 %v213
    %v1158 = vunpack.c.l.b16 %v214
    %v1159 = vunpack.c.l.b16 %v215
    %v1160 = vunpack.c.l.b16 %v216
    %v1161 = vunpack.c.l.b16 %v217
    %v1162 = vunpack.c.l.b16 %v218
    %v1163 = vunpack.c.l.b16 %v219
    %v1164 = vunpack.c.l.b16 %v220
    %v1165 = vunpack.c.l.b16 %v221
    %v1166 = vunpack.c.l.b16 %v222
    %v1167 = vunpack.c.l.b16 %v223
    %v1168 = vunpack.c.l.b16 %v224
    %v1169 = vunpack.c.l.b16 %v225
    %v1170 = vunpack.c.l.b16 %v226
    %v1171 = vunpack.c.l.b16 %v227
    %v1172 = vunpack.c.l.b16 %v228
    %v1173 = vunpack.c.l.b16 %v229
    %v1174 = vunpack.c.l.b16 %v230
    %v1175 = vunpack.c.l.b16 %v231
    %v1176 = vunpack.c.l.b16 %v232
    %v1177 = vunpack.c.l.b16 %v233
    %v1178 = vunpack.c.l.b16 %v234
    %v1179 = vpack.c.b16 %v1052, %v1051
    %v1180 = vpack.c.b16 %v1054, %v1053
    %v1181 = vpack.c.b16 %v1056, %v1055
    %v1182 = vpack.c.b16 %v1058, %v1057
    %v1183 = vpack.c.b16 %v1060, %v1059
    %v1184 = vpack.c.b16 %v1062, %v1061
    %v1185 = vpack.c.b16 %v1064, %v1063
    %v1186 = vpack.c.b16 %v1066, %v1065
    %v1187 = vpack.c.b16 %v1068, %v1067
    %v1188 = vpack.c.b16 %v1070, %v1069
    %v1189 = vpack.c.b16 %v1072, %v1071
    %v1190 = vpack.c.b16 %v1074, %v1073
    %v1191 = vpack.c.b16 %v1076, %v1075
    %v1192 = vpack.c.b16 %v1078, %v1077
    %v1193 = vpack.c.b16 %v1080, %v1079
    %v1194 = vpack.c.b16 %v1082, %v1081
    %v1195 = vpack.c.b16 %v1084, %v1083
    %v1196 = vpack.c.b16 %v1086, %v1085
    %v1197 = vpack.c.b16 %v1088, %v1087
    %v1198 = vpack.c.b16 %v1090, %v1089
    %v1199 = vpack.c.b16 %v1092, %v1091
    %v1200 = vpack.c.b16 %v1094, %v1093
    %v1201 = vpack.c.b16 %v1096, %v1095
    %v1202 = vpack.c.b16 %v1098, %v1097
    %v1203 = vpack.c.b16 %v1100, %v1099
    %v1204 = vpack.c.b16 %v1102, %v1101
    %v1205 = vpack.c.b16 %v1104, %v1103
    %v1206 = vpack.c.b16 %v1106, %v1105
    %v1207 = vpack.c.b16 %v1108, %v1107
    %v1208 = vpack.c.b16 %v1110, %v1109
    %v1209 = vpack.c.b16 %v1112, %v1111
    %v1210 = vpack.c.b16 %v1114, %v1113
    %v1211 = vpack.c.b16 %v1116, %v1115
    %v1212 = vpack.c.b16 %v1118, %v1117
    %v1213 = vpack.c.b16 %v1120, %v1119
    %v1214 = vpack.c.b16 %v1122, %v1121
    %v1215 = vpack.c.b16 %v1124, %v1123
    %v1216 = vpack.c.b16 %v1126, %v1125
    %v1217 = vpack.c.b16 %v1128, %v1127
    %v1218 = vpack.c.b16 %v1130, %v1129
    %v1219 = vpack.c.b16 %v1132, %v1131
    %v1220 = vpack.c.b16 %v1134, %v1133
    %v1221 = vpack.c.b16 %v1136, %v1135
    %v1222 = vpack.c.b16 %v1138, %v1137
    %v1223 = vpack.c.b16 %v1140, %v1139
    %v1224 = vpack.c.b16 %v1142, %v1141
    %v1225 = vpack.c.b16 %v1144, %v1143
    %v1226 = vpack.c.b16 %v1146, %v1145
    %v1227 = vpack.c.b16 %v1148, %v1147
    %v1228 = vpack.c.b16 %v1150, %v1149
    %v1229 = vpack.c.b16 %v1152, %v1151
    %v1230 = vpack.c.b16 %v1154, %v1153
    %v1231 = vpack.c.b16 %v1156, %v1155
    %v1232 = vpack.c.b16 %v1158, %v1157
    %v1233 = vpack.c.b16 %v1160, %v1159
    %v1234 = vpack.c.b16 %v1162, %v1161
    %v1235 = vpack.c.b16 %v1164, %v1163
    %v1236 = vpack.c.b16 %v1166, %v1165
    %v1237 = vpack.c.b16 %v1168, %v1167
    %v1238 = vpack.c.b16 %v1170, %v1169
    %v1239 = vpack.c.b16 %v1172, %v1171
    %v1240 = vpack.c.b16 %v1174, %v1173
    %v1241 = vpack.c.b16 %v1176, %v1175
    %v1242 = vpack.c.b16 %v1178, %v1177
    %1307 = vmatprep.subr.bf16.mxu0 0
    %1308 = vmatpush1.bf16.msra.mxu0 %v1179
    %1309 = vmatprep.subr.bf16.mxu0 0
    %1310 = vmatpush1.bf16.msra.mxu0 %v1180
    %1311 = vmatprep.subr.bf16.mxu0 0
    %1312 = vmatpush1.bf16.msra.mxu0 %v1181
    %1313 = vmatprep.subr.bf16.mxu0 0
    %1314 = vmatpush1.bf16.msra.mxu0 %v1182
    %1315 = vmatprep.subr.bf16.mxu0 0
    %1316 = vmatpush1.bf16.msra.mxu0 %v1183
    %1317 = vmatprep.subr.bf16.mxu0 0
    %1318 = vmatpush1.bf16.msra.mxu0 %v1184
    %1319 = vmatprep.subr.bf16.mxu0 0
    %1320 = vmatpush1.bf16.msra.mxu0 %v1185
    %1321 = vmatprep.subr.bf16.mxu0 0
    %1322 = vmatpush1.bf16.msra.mxu0 %v1186
    %1323 = vmatprep.subr.bf16.mxu0 0
    %1324 = vmatpush1.bf16.msra.mxu0 %v1187
    %1325 = vmatprep.subr.bf16.mxu0 0
    %1326 = vmatpush1.bf16.msra.mxu0 %v1188
    %1327 = vmatprep.subr.bf16.mxu0 0
    %1328 = vmatpush1.bf16.msra.mxu0 %v1189
    %1329 = vmatprep.subr.bf16.mxu0 0
    %1330 = vmatpush1.bf16.msra.mxu0 %v1190
    %1331 = vmatprep.subr.bf16.mxu0 0
    %1332 = vmatpush1.bf16.msra.mxu0 %v1191
    %1333 = vmatprep.subr.bf16.mxu0 0
    %1334 = vmatpush1.bf16.msra.mxu0 %v1192
    %1335 = vmatprep.subr.bf16.mxu0 0
    %1336 = vmatpush1.bf16.msra.mxu0 %v1193
    %1337 = vmatprep.subr.bf16.mxu0 0
    %1338 = vmatpush1.bf16.msra.mxu0 %v1194
    %1339 = vmatprep.mubr.bf16.mxu0 %v100
    %1340 = vmatmul.mubr.bf16.gmra.mrb[0].mxu0 %v99
    %v1341 = vpop.f32.mrb[0].mxu0
    %v1342 = vadd.f32 %v918, %v1341
    %v1343 = vpop.f32.mrb[0].mxu0
    %v1344 = vpop.f32.mrb[0].mxu0
    %v1345 = vpop.f32.mrb[0].mxu0
    %1346 = vdwg.mxu0
    %1347 = vmatprep.subr.bf16.mxu0 0
    %1348 = vmatpush1.bf16.msra.mxu0 %v1195
    %1349 = vmatprep.subr.bf16.mxu0 0
    %1350 = vmatpush1.bf16.msra.mxu0 %v1196
    %1351 = vmatprep.subr.bf16.mxu0 0
    %1352 = vmatpush1.bf16.msra.mxu0 %v1197
    %1353 = vmatprep.subr.bf16.mxu0 0
    %1354 = vmatpush1.bf16.msra.mxu0 %v1198
    %1355 = vmatprep.subr.bf16.mxu0 0
    %1356 = vmatpush1.bf16.msra.mxu0 %v1199
    %1357 = vmatprep.subr.bf16.mxu0 0
    %1358 = vmatpush1.bf16.msra.mxu0 %v1200
    %1359 = vmatprep.subr.bf16.mxu0 0
    %1360 = vmatpush1.bf16.msra.mxu0 %v1201
    %1361 = vmatprep.subr.bf16.mxu0 0
    %1362 = vmatpush1.bf16.msra.mxu0 %v1202
    %1363 = vmatprep.subr.bf16.mxu0 0
    %1364 = vmatpush1.bf16.msra.mxu0 %v1203
    %1365 = vmatprep.subr.bf16.mxu0 0
    %1366 = vmatpush1.bf16.msra.mxu0 %v1204
    %1367 = vmatprep.subr.bf16.mxu0 0
    %1368 = vmatpush1.bf16.msra.mxu0 %v1205
    %1369 = vmatprep.subr.bf16.mxu0 0
    %1370 = vmatpush1.bf16.msra.mxu0 %v1206
    %1371 = vmatprep.subr.bf16.mxu0 0
    %1372 = vmatpush1.bf16.msra.mxu0 %v1207
    %1373 = vmatprep.subr.bf16.mxu0 0
    %1374 = vmatpush1.bf16.msra.mxu0 %v1208
    %1375 = vmatprep.subr.bf16.mxu0 0
    %1376 = vmatpush1.bf16.msra.mxu0 %v1209
    %1377 = vmatprep.subr.bf16.mxu0 0
    %1378 = vmatpush1.bf16.msra.mxu0 %v1210
    %1379 = vmatprep.mubr.bf16.mxu0 %v102
    %1380 = vmatmul.mubr.bf16.gmra.mrb[0].mxu0 %v101
    %v1381 = vpop.f32.mrb[0].mxu0
    %v1382 = vadd.f32 %v1342, %v1381
    %v1383 = vpop.f32.mrb[0].mxu0
    %v1384 = vpop.f32.mrb[0].mxu0
    %v1385 = vpop.f32.mrb[0].mxu0
    %1386 = vdwg.mxu0
    %1387 = vmatprep.subr.bf16.mxu0 0
    %1388 = vmatpush1.bf16.msra.mxu0 %v1211
    %1389 = vmatprep.subr.bf16.mxu0 0
    %1390 = vmatpush1.bf16.msra.mxu0 %v1212
    %1391 = vmatprep.subr.bf16.mxu0 0
    %1392 = vmatpush1.bf16.msra.mxu0 %v1213
    %1393 = vmatprep.subr.bf16.mxu0 0
    %1394 = vmatpush1.bf16.msra.mxu0 %v1214
    %1395 = vmatprep.subr.bf16.mxu0 0
    %1396 = vmatpush1.bf16.msra.mxu0 %v1215
    %1397 = vmatprep.subr.bf16.mxu0 0
    %1398 = vmatpush1.bf16.msra.mxu0 %v1216
    %1399 = vmatprep.subr.bf16.mxu0 0
    %1400 = vmatpush1.bf16.msra.mxu0 %v1217
    %1401 = vmatprep.subr.bf16.mxu0 0
    %1402 = vmatpush1.bf16.msra.mxu0 %v1218
    %1403 = vmatprep.subr.bf16.mxu0 0
    %1404 = vmatpush1.bf16.msra.mxu0 %v1219
    %1405 = vmatprep.subr.bf16.mxu0 0
    %1406 = vmatpush1.bf16.msra.mxu0 %v1220
    %1407 = vmatprep.subr.bf16.mxu0 0
    %1408 = vmatpush1.bf16.msra.mxu0 %v1221
    %1409 = vmatprep.subr.bf16.mxu0 0
    %1410 = vmatpush1.bf16.msra.mxu0 %v1222
    %1411 = vmatprep.subr.bf16.mxu0 0
    %1412 = vmatpush1.bf16.msra.mxu0 %v1223
    %1413 = vmatprep.subr.bf16.mxu0 0
    %1414 = vmatpush1.bf16.msra.mxu0 %v1224
    %1415 = vmatprep.subr.bf16.mxu0 0
    %1416 = vmatpush1.bf16.msra.mxu0 %v1225
    %1417 = vmatprep.subr.bf16.mxu0 0
    %1418 = vmatpush1.bf16.msra.mxu0 %v1226
    %1419 = vmatprep.mubr.bf16.mxu0 %v104
    %1420 = vmatmul.mubr.bf16.gmra.mrb[0].mxu0 %v103
    %v1421 = vpop.f32.mrb[0].mxu0
    %v1422 = vadd.f32 %v1382, %v1421
    %v1423 = vpop.f32.mrb[0].mxu0
    %v1424 = vpop.f32.mrb[0].mxu0
    %v1425 = vpop.f32.mrb[0].mxu0
    %1426 = vdwg.mxu0
    %1427 = vmatprep.subr.bf16.mxu0 0
    %1428 = vmatpush1.bf16.msra.mxu0 %v1227
    %1429 = vmatprep.subr.bf16.mxu0 0
    %1430 = vmatpush1.bf16.msra.mxu0 %v1228
    %1431 = vmatprep.subr.bf16.mxu0 0
    %1432 = vmatpush1.bf16.msra.mxu0 %v1229
    %1433 = vmatprep.subr.bf16.mxu0 0
    %1434 = vmatpush1.bf16.msra.mxu0 %v1230
    %1435 = vmatprep.subr.bf16.mxu0 0
    %1436 = vmatpush1.bf16.msra.mxu0 %v1231
    %1437 = vmatprep.subr.bf16.mxu0 0
    %1438 = vmatpush1.bf16.msra.mxu0 %v1232
    %1439 = vmatprep.subr.bf16.mxu0 0
    %1440 = vmatpush1.bf16.msra.mxu0 %v1233
    %1441 = vmatprep.subr.bf16.mxu0 0
    %1442 = vmatpush1.bf16.msra.mxu0 %v1234
    %1443 = vmatprep.subr.bf16.mxu0 0
    %1444 = vmatpush1.bf16.msra.mxu0 %v1235
    %1445 = vmatprep.subr.bf16.mxu0 0
    %1446 = vmatpush1.bf16.msra.mxu0 %v1236
    %1447 = vmatprep.subr.bf16.mxu0 0
    %1448 = vmatpush1.bf16.msra.mxu0 %v1237
    %1449 = vmatprep.subr.bf16.mxu0 0
    %1450 = vmatpush1.bf16.msra.mxu0 %v1238
    %1451 = vmatprep.subr.bf16.mxu0 0
    %1452 = vmatpush1.bf16.msra.mxu0 %v1239
    %1453 = vmatprep.subr.bf16.mxu0 0
    %1454 = vmatpush1.bf16.msra.mxu0 %v1240
    %1455 = vmatprep.subr.bf16.mxu0 0
    %1456 = vmatpush1.bf16.msra.mxu0 %v1241
    %1457 = vmatprep.subr.bf16.mxu0 0
    %1458 = vmatpush1.bf16.msra.mxu0 %v1242
    %1459 = vmatprep.mubr.bf16.mxu0 %v106
    %1460 = vmatmul.mubr.bf16.gmra.mrb[0].mxu0 %v105
    %v1461 = vpop.f32.mrb[0].mxu0
    %v1462 = vadd.f32 %v1422, %v1461
    %v1463 = vpop.f32.mrb[0].mxu0
    %v1464 = vpop.f32.mrb[0].mxu0
    %v1465 = vpop.f32.mrb[0].mxu0
    %1466 = vdwg.mxu0
    %v1467 = vld [vmem:[#allocation2 + $0x80] sm:$0xff]
    %v1468 = vld [vmem:[#allocation2 + $0x88] sm:$0xff]
    %v1469 = vld [vmem:[#allocation2 + $0x90] sm:$0xff]
    %v1470 = vld [vmem:[#allocation2 + $0x98] sm:$0xff]
    %v1471 = vld [vmem:[#allocation2 + $0xa0] sm:$0xff]
    %v1472 = vld [vmem:[#allocation2 + $0xa8] sm:$0xff]
    %v1473 = vld [vmem:[#allocation2 + $0xb0] sm:$0xff]
    %v1474 = vld [vmem:[#allocation2 + $0xb8] sm:$0xff]
    %v1475 = vpack.c.bf16 %v1467, %v1467
    %v1476 = vpack.c.bf16 %v1468, %v1468
    %v1477 = vpack.c.bf16 %v1469, %v1469
    %v1478 = vpack.c.bf16 %v1470, %v1470
    %v1479 = vpack.c.bf16 %v1471, %v1471
    %v1480 = vpack.c.bf16 %v1472, %v1472
    %v1481 = vpack.c.bf16 %v1473, %v1473
    %v1482 = vpack.c.bf16 %v1474, %v1474
    %v1483 = vld [vmem:[#allocation4 + $0x400] sm:$0xf]
    %v1484 = vld [vmem:[#allocation4 + $0x404] sm:$0xf]
    %v1485 = vld [vmem:[#allocation4 + $0x408] sm:$0xf]
    %v1486 = vld [vmem:[#allocation4 + $0x40c] sm:$0xf]
    %v1487 = vld [vmem:[#allocation4 + $0x410] sm:$0xf]
    %v1488 = vld [vmem:[#allocation4 + $0x414] sm:$0xf]
    %v1489 = vld [vmem:[#allocation4 + $0x418] sm:$0xf]
    %v1490 = vld [vmem:[#allocation4 + $0x41c] sm:$0xf]
    %v1491 = vld [vmem:[#allocation4 + $0x420] sm:$0xf]
    %v1492 = vld [vmem:[#allocation4 + $0x424] sm:$0xf]
    %v1493 = vld [vmem:[#allocation4 + $0x428] sm:$0xf]
    %v1494 = vld [vmem:[#allocation4 + $0x42c] sm:$0xf]
    %v1495 = vld [vmem:[#allocation4 + $0x430] sm:$0xf]
    %v1496 = vld [vmem:[#allocation4 + $0x434] sm:$0xf]
    %v1497 = vld [vmem:[#allocation4 + $0x438] sm:$0xf]
    %v1498 = vld [vmem:[#allocation4 + $0x43c] sm:$0xf]
    %v1499 = vld [vmem:[#allocation4 + $0x440] sm:$0xf]
    %v1500 = vld [vmem:[#allocation4 + $0x444] sm:$0xf]
    %v1501 = vld [vmem:[#allocation4 + $0x448] sm:$0xf]
    %v1502 = vld [vmem:[#allocation4 + $0x44c] sm:$0xf]
    %v1503 = vld [vmem:[#allocation4 + $0x450] sm:$0xf]
    %v1504 = vld [vmem:[#allocation4 + $0x454] sm:$0xf]
    %v1505 = vld [vmem:[#allocation4 + $0x458] sm:$0xf]
    %v1506 = vld [vmem:[#allocation4 + $0x45c] sm:$0xf]
    %v1507 = vld [vmem:[#allocation4 + $0x460] sm:$0xf]
    %v1508 = vld [vmem:[#allocation4 + $0x464] sm:$0xf]
    %v1509 = vld [vmem:[#allocation4 + $0x468] sm:$0xf]
    %v1510 = vld [vmem:[#allocation4 + $0x46c] sm:$0xf]
    %v1511 = vld [vmem:[#allocation4 + $0x470] sm:$0xf]
    %v1512 = vld [vmem:[#allocation4 + $0x474] sm:$0xf]
    %v1513 = vld [vmem:[#allocation4 + $0x478] sm:$0xf]
    %v1514 = vld [vmem:[#allocation4 + $0x47c] sm:$0xf]
    %v1515 = vld [vmem:[#allocation4 + $0x480] sm:$0xf]
    %v1516 = vld [vmem:[#allocation4 + $0x484] sm:$0xf]
    %v1517 = vld [vmem:[#allocation4 + $0x488] sm:$0xf]
    %v1518 = vld [vmem:[#allocation4 + $0x48c] sm:$0xf]
    %v1519 = vld [vmem:[#allocation4 + $0x490] sm:$0xf]
    %v1520 = vld [vmem:[#allocation4 + $0x494] sm:$0xf]
    %v1521 = vld [vmem:[#allocation4 + $0x498] sm:$0xf]
    %v1522 = vld [vmem:[#allocation4 + $0x49c] sm:$0xf]
    %v1523 = vld [vmem:[#allocation4 + $0x4a0] sm:$0xf]
    %v1524 = vld [vmem:[#allocation4 + $0x4a4] sm:$0xf]
    %v1525 = vld [vmem:[#allocation4 + $0x4a8] sm:$0xf]
    %v1526 = vld [vmem:[#allocation4 + $0x4ac] sm:$0xf]
    %v1527 = vld [vmem:[#allocation4 + $0x4b0] sm:$0xf]
    %v1528 = vld [vmem:[#allocation4 + $0x4b4] sm:$0xf]
    %v1529 = vld [vmem:[#allocation4 + $0x4b8] sm:$0xf]
    %v1530 = vld [vmem:[#allocation4 + $0x4bc] sm:$0xf]
    %v1531 = vld [vmem:[#allocation4 + $0x4c0] sm:$0xf]
    %v1532 = vld [vmem:[#allocation4 + $0x4c4] sm:$0xf]
    %v1533 = vld [vmem:[#allocation4 + $0x4c8] sm:$0xf]
    %v1534 = vld [vmem:[#allocation4 + $0x4cc] sm:$0xf]
    %v1535 = vld [vmem:[#allocation4 + $0x4d0] sm:$0xf]
    %v1536 = vld [vmem:[#allocation4 + $0x4d4] sm:$0xf]
    %v1537 = vld [vmem:[#allocation4 + $0x4d8] sm:$0xf]
    %v1538 = vld [vmem:[#allocation4 + $0x4dc] sm:$0xf]
    %v1539 = vld [vmem:[#allocation4 + $0x4e0] sm:$0xf]
    %v1540 = vld [vmem:[#allocation4 + $0x4e4] sm:$0xf]
    %v1541 = vld [vmem:[#allocation4 + $0x4e8] sm:$0xf]
    %v1542 = vld [vmem:[#allocation4 + $0x4ec] sm:$0xf]
    %v1543 = vld [vmem:[#allocation4 + $0x4f0] sm:$0xf]
    %v1544 = vld [vmem:[#allocation4 + $0x4f4] sm:$0xf]
    %v1545 = vld [vmem:[#allocation4 + $0x4f8] sm:$0xf]
    %v1546 = vld [vmem:[#allocation4 + $0x4fc] sm:$0xf]
    %v1547 = vld [vmem:[#allocation4 + $0x500] sm:$0xf]
    %v1548 = vld [vmem:[#allocation4 + $0x504] sm:$0xf]
    %v1549 = vld [vmem:[#allocation4 + $0x508] sm:$0xf]
    %v1550 = vld [vmem:[#allocation4 + $0x50c] sm:$0xf]
    %v1551 = vld [vmem:[#allocation4 + $0x510] sm:$0xf]
    %v1552 = vld [vmem:[#allocation4 + $0x514] sm:$0xf]
    %v1553 = vld [vmem:[#allocation4 + $0x518] sm:$0xf]
    %v1554 = vld [vmem:[#allocation4 + $0x51c] sm:$0xf]
    %v1555 = vld [vmem:[#allocation4 + $0x520] sm:$0xf]
    %v1556 = vld [vmem:[#allocation4 + $0x524] sm:$0xf]
    %v1557 = vld [vmem:[#allocation4 + $0x528] sm:$0xf]
    %v1558 = vld [vmem:[#allocation4 + $0x52c] sm:$0xf]
    %v1559 = vld [vmem:[#allocation4 + $0x530] sm:$0xf]
    %v1560 = vld [vmem:[#allocation4 + $0x534] sm:$0xf]
    %v1561 = vld [vmem:[#allocation4 + $0x538] sm:$0xf]
    %v1562 = vld [vmem:[#allocation4 + $0x53c] sm:$0xf]
    %v1563 = vld [vmem:[#allocation4 + $0x540] sm:$0xf]
    %v1564 = vld [vmem:[#allocation4 + $0x544] sm:$0xf]
    %v1565 = vld [vmem:[#allocation4 + $0x548] sm:$0xf]
    %v1566 = vld [vmem:[#allocation4 + $0x54c] sm:$0xf]
    %v1567 = vld [vmem:[#allocation4 + $0x550] sm:$0xf]
    %v1568 = vld [vmem:[#allocation4 + $0x554] sm:$0xf]
    %v1569 = vld [vmem:[#allocation4 + $0x558] sm:$0xf]
    %v1570 = vld [vmem:[#allocation4 + $0x55c] sm:$0xf]
    %v1571 = vld [vmem:[#allocation4 + $0x560] sm:$0xf]
    %v1572 = vld [vmem:[#allocation4 + $0x564] sm:$0xf]
    %v1573 = vld [vmem:[#allocation4 + $0x568] sm:$0xf]
    %v1574 = vld [vmem:[#allocation4 + $0x56c] sm:$0xf]
    %v1575 = vld [vmem:[#allocation4 + $0x570] sm:$0xf]
    %v1576 = vld [vmem:[#allocation4 + $0x574] sm:$0xf]
    %v1577 = vld [vmem:[#allocation4 + $0x578] sm:$0xf]
    %v1578 = vld [vmem:[#allocation4 + $0x57c] sm:$0xf]
    %v1579 = vld [vmem:[#allocation4 + $0x580] sm:$0xf]
    %v1580 = vld [vmem:[#allocation4 + $0x584] sm:$0xf]
    %v1581 = vld [vmem:[#allocation4 + $0x588] sm:$0xf]
    %v1582 = vld [vmem:[#allocation4 + $0x58c] sm:$0xf]
    %v1583 = vld [vmem:[#allocation4 + $0x590] sm:$0xf]
    %v1584 = vld [vmem:[#allocation4 + $0x594] sm:$0xf]
    %v1585 = vld [vmem:[#allocation4 + $0x598] sm:$0xf]
    %v1586 = vld [vmem:[#allocation4 + $0x59c] sm:$0xf]
    %v1587 = vld [vmem:[#allocation4 + $0x5a0] sm:$0xf]
    %v1588 = vld [vmem:[#allocation4 + $0x5a4] sm:$0xf]
    %v1589 = vld [vmem:[#allocation4 + $0x5a8] sm:$0xf]
    %v1590 = vld [vmem:[#allocation4 + $0x5ac] sm:$0xf]
    %v1591 = vld [vmem:[#allocation4 + $0x5b0] sm:$0xf]
    %v1592 = vld [vmem:[#allocation4 + $0x5b4] sm:$0xf]
    %v1593 = vld [vmem:[#allocation4 + $0x5b8] sm:$0xf]
    %v1594 = vld [vmem:[#allocation4 + $0x5bc] sm:$0xf]
    %v1595 = vld [vmem:[#allocation4 + $0x5c0] sm:$0xf]
    %v1596 = vld [vmem:[#allocation4 + $0x5c4] sm:$0xf]
    %v1597 = vld [vmem:[#allocation4 + $0x5c8] sm:$0xf]
    %v1598 = vld [vmem:[#allocation4 + $0x5cc] sm:$0xf]
    %v1599 = vld [vmem:[#allocation4 + $0x5d0] sm:$0xf]
    %v1600 = vld [vmem:[#allocation4 + $0x5d4] sm:$0xf]
    %v1601 = vld [vmem:[#allocation4 + $0x5d8] sm:$0xf]
    %v1602 = vld [vmem:[#allocation4 + $0x5dc] sm:$0xf]
    %v1603 = vld [vmem:[#allocation4 + $0x5e0] sm:$0xf]
    %v1604 = vld [vmem:[#allocation4 + $0x5e4] sm:$0xf]
    %v1605 = vld [vmem:[#allocation4 + $0x5e8] sm:$0xf]
    %v1606 = vld [vmem:[#allocation4 + $0x5ec] sm:$0xf]
    %v1607 = vld [vmem:[#allocation4 + $0x5f0] sm:$0xf]
    %v1608 = vld [vmem:[#allocation4 + $0x5f4] sm:$0xf]
    %v1609 = vld [vmem:[#allocation4 + $0x5f8] sm:$0xf]
    %v1610 = vld [vmem:[#allocation4 + $0x5fc] sm:$0xf]
    %v1739 = vunpack.c.l.b16 %v1483
    %v1740 = vunpack.c.l.b16 %v1484
    %v1741 = vunpack.c.l.b16 %v1485
    %v1742 = vunpack.c.l.b16 %v1486
    %v1743 = vunpack.c.l.b16 %v1487
    %v1744 = vunpack.c.l.b16 %v1488
    %v1745 = vunpack.c.l.b16 %v1489
    %v1746 = vunpack.c.l.b16 %v1490
    %v1747 = vunpack.c.l.b16 %v1491
    %v1748 = vunpack.c.l.b16 %v1492
    %v1749 = vunpack.c.l.b16 %v1493
    %v1750 = vunpack.c.l.b16 %v1494
    %v1751 = vunpack.c.l.b16 %v1495
    %v1752 = vunpack.c.l.b16 %v1496
    %v1753 = vunpack.c.l.b16 %v1497
    %v1754 = vunpack.c.l.b16 %v1498
    %v1755 = vunpack.c.l.b16 %v1499
    %v1756 = vunpack.c.l.b16 %v1500
    %v1757 = vunpack.c.l.b16 %v1501
    %v1758 = vunpack.c.l.b16 %v1502
    %v1759 = vunpack.c.l.b16 %v1503
    %v1760 = vunpack.c.l.b16 %v1504
    %v1761 = vunpack.c.l.b16 %v1505
    %v1762 = vunpack.c.l.b16 %v1506
    %v1763 = vunpack.c.l.b16 %v1507
    %v1764 = vunpack.c.l.b16 %v1508
    %v1765 = vunpack.c.l.b16 %v1509
    %v1766 = vunpack.c.l.b16 %v1510
    %v1767 = vunpack.c.l.b16 %v1511
    %v1768 = vunpack.c.l.b16 %v1512
    %v1769 = vunpack.c.l.b16 %v1513
    %v1770 = vunpack.c.l.b16 %v1514
    %v1771 = vunpack.c.l.b16 %v1515
    %v1772 = vunpack.c.l.b16 %v1516
    %v1773 = vunpack.c.l.b16 %v1517
    %v1774 = vunpack.c.l.b16 %v1518
    %v1775 = vunpack.c.l.b16 %v1519
    %v1776 = vunpack.c.l.b16 %v1520
    %v1777 = vunpack.c.l.b16 %v1521
    %v1778 = vunpack.c.l.b16 %v1522
    %v1779 = vunpack.c.l.b16 %v1523
    %v1780 = vunpack.c.l.b16 %v1524
    %v1781 = vunpack.c.l.b16 %v1525
    %v1782 = vunpack.c.l.b16 %v1526
    %v1783 = vunpack.c.l.b16 %v1527
    %v1784 = vunpack.c.l.b16 %v1528
    %v1785 = vunpack.c.l.b16 %v1529
    %v1786 = vunpack.c.l.b16 %v1530
    %v1787 = vunpack.c.l.b16 %v1531
    %v1788 = vunpack.c.l.b16 %v1532
    %v1789 = vunpack.c.l.b16 %v1533
    %v1790 = vunpack.c.l.b16 %v1534
    %v1791 = vunpack.c.l.b16 %v1535
    %v1792 = vunpack.c.l.b16 %v1536
    %v1793 = vunpack.c.l.b16 %v1537
    %v1794 = vunpack.c.l.b16 %v1538
    %v1795 = vunpack.c.l.b16 %v1539
    %v1796 = vunpack.c.l.b16 %v1540
    %v1797 = vunpack.c.l.b16 %v1541
    %v1798 = vunpack.c.l.b16 %v1542
    %v1799 = vunpack.c.l.b16 %v1543
    %v1800 = vunpack.c.l.b16 %v1544
    %v1801 = vunpack.c.l.b16 %v1545
    %v1802 = vunpack.c.l.b16 %v1546
    %v1803 = vunpack.c.l.b16 %v1547
    %v1804 = vunpack.c.l.b16 %v1548
    %v1805 = vunpack.c.l.b16 %v1549
    %v1806 = vunpack.c.l.b16 %v1550
    %v1807 = vunpack.c.l.b16 %v1551
    %v1808 = vunpack.c.l.b16 %v1552
    %v1809 = vunpack.c.l.b16 %v1553
    %v1810 = vunpack.c.l.b16 %v1554
    %v1811 = vunpack.c.l.b16 %v1555
    %v1812 = vunpack.c.l.b16 %v1556
    %v1813 = vunpack.c.l.b16 %v1557
    %v1814 = vunpack.c.l.b16 %v1558
    %v1815 = vunpack.c.l.b16 %v1559
    %v1816 = vunpack.c.l.b16 %v1560
    %v1817 = vunpack.c.l.b16 %v1561
    %v1818 = vunpack.c.l.b16 %v1562
    %v1819 = vunpack.c.l.b16 %v1563
    %v1820 = vunpack.c.l.b16 %v1564
    %v1821 = vunpack.c.l.b16 %v1565
    %v1822 = vunpack.c.l.b16 %v1566
    %v1823 = vunpack.c.l.b16 %v1567
    %v1824 = vunpack.c.l.b16 %v1568
    %v1825 = vunpack.c.l.b16 %v1569
    %v1826 = vunpack.c.l.b16 %v1570
    %v1827 = vunpack.c.l.b16 %v1571
    %v1828 = vunpack.c.l.b16 %v1572
    %v1829 = vunpack.c.l.b16 %v1573
    %v1830 = vunpack.c.l.b16 %v1574
    %v1831 = vunpack.c.l.b16 %v1575
    %v1832 = vunpack.c.l.b16 %v1576
    %v1833 = vunpack.c.l.b16 %v1577
    %v1834 = vunpack.c.l.b16 %v1578
    %v1835 = vunpack.c.l.b16 %v1579
    %v1836 = vunpack.c.l.b16 %v1580
    %v1837 = vunpack.c.l.b16 %v1581
    %v1838 = vunpack.c.l.b16 %v1582
    %v1839 = vunpack.c.l.b16 %v1583
    %v1840 = vunpack.c.l.b16 %v1584
    %v1841 = vunpack.c.l.b16 %v1585
    %v1842 = vunpack.c.l.b16 %v1586
    %v1843 = vunpack.c.l.b16 %v1587
    %v1844 = vunpack.c.l.b16 %v1588
    %v1845 = vunpack.c.l.b16 %v1589
    %v1846 = vunpack.c.l.b16 %v1590
    %v1847 = vunpack.c.l.b16 %v1591
    %v1848 = vunpack.c.l.b16 %v1592
    %v1849 = vunpack.c.l.b16 %v1593
    %v1850 = vunpack.c.l.b16 %v1594
    %v1851 = vunpack.c.l.b16 %v1595
    %v1852 = vunpack.c.l.b16 %v1596
    %v1853 = vunpack.c.l.b16 %v1597
    %v1854 = vunpack.c.l.b16 %v1598
    %v1855 = vunpack.c.l.b16 %v1599
    %v1856 = vunpack.c.l.b16 %v1600
    %v1857 = vunpack.c.l.b16 %v1601
    %v1858 = vunpack.c.l.b16 %v1602
    %v1859 = vunpack.c.l.b16 %v1603
    %v1860 = vunpack.c.l.b16 %v1604
    %v1861 = vunpack.c.l.b16 %v1605
    %v1862 = vunpack.c.l.b16 %v1606
    %v1863 = vunpack.c.l.b16 %v1607
    %v1864 = vunpack.c.l.b16 %v1608
    %v1865 = vunpack.c.l.b16 %v1609
    %v1866 = vunpack.c.l.b16 %v1610
    %v1867 = vpack.c.b16 %v1740, %v1739
    %v1868 = vpack.c.b16 %v1742, %v1741
    %v1869 = vpack.c.b16 %v1744, %v1743
    %v1870 = vpack.c.b16 %v1746, %v1745
    %v1871 = vpack.c.b16 %v1748, %v1747
    %v1872 = vpack.c.b16 %v1750, %v1749
    %v1873 = vpack.c.b16 %v1752, %v1751
    %v1874 = vpack.c.b16 %v1754, %v1753
    %v1875 = vpack.c.b16 %v1756, %v1755
    %v1876 = vpack.c.b16 %v1758, %v1757
    %v1877 = vpack.c.b16 %v1760, %v1759
    %v1878 = vpack.c.b16 %v1762, %v1761
    %v1879 = vpack.c.b16 %v1764, %v1763
    %v1880 = vpack.c.b16 %v1766, %v1765
    %v1881 = vpack.c.b16 %v1768, %v1767
    %v1882 = vpack.c.b16 %v1770, %v1769
    %v1883 = vpack.c.b16 %v1772, %v1771
    %v1884 = vpack.c.b16 %v1774, %v1773
    %v1885 = vpack.c.b16 %v1776, %v1775
    %v1886 = vpack.c.b16 %v1778, %v1777
    %v1887 = vpack.c.b16 %v1780, %v1779
    %v1888 = vpack.c.b16 %v1782, %v1781
    %v1889 = vpack.c.b16 %v1784, %v1783
    %v1890 = vpack.c.b16 %v1786, %v1785
    %v1891 = vpack.c.b16 %v1788, %v1787
    %v1892 = vpack.c.b16 %v1790, %v1789
    %v1893 = vpack.c.b16 %v1792, %v1791
    %v1894 = vpack.c.b16 %v1794, %v1793
    %v1895 = vpack.c.b16 %v1796, %v1795
    %v1896 = vpack.c.b16 %v1798, %v1797
    %v1897 = vpack.c.b16 %v1800, %v1799
    %v1898 = vpack.c.b16 %v1802, %v1801
    %v1899 = vpack.c.b16 %v1804, %v1803
    %v1900 = vpack.c.b16 %v1806, %v1805
    %v1901 = vpack.c.b16 %v1808, %v1807
    %v1902 = vpack.c.b16 %v1810, %v1809
    %v1903 = vpack.c.b16 %v1812, %v1811
    %v1904 = vpack.c.b16 %v1814, %v1813
    %v1905 = vpack.c.b16 %v1816, %v1815
    %v1906 = vpack.c.b16 %v1818, %v1817
    %v1907 = vpack.c.b16 %v1820, %v1819
    %v1908 = vpack.c.b16 %v1822, %v1821
    %v1909 = vpack.c.b16 %v1824, %v1823
    %v1910 = vpack.c.b16 %v1826, %v1825
    %v1911 = vpack.c.b16 %v1828, %v1827
    %v1912 = vpack.c.b16 %v1830, %v1829
    %v1913 = vpack.c.b16 %v1832, %v1831
    %v1914 = vpack.c.b16 %v1834, %v1833
    %v1915 = vpack.c.b16 %v1836, %v1835
    %v1916 = vpack.c.b16 %v1838, %v1837
    %v1917 = vpack.c.b16 %v1840, %v1839
    %v1918 = vpack.c.b16 %v1842, %v1841
    %v1919 = vpack.c.b16 %v1844, %v1843
    %v1920 = vpack.c.b16 %v1846, %v1845
    %v1921 = vpack.c.b16 %v1848, %v1847
    %v1922 = vpack.c.b16 %v1850, %v1849
    %v1923 = vpack.c.b16 %v1852, %v1851
    %v1924 = vpack.c.b16 %v1854, %v1853
    %v1925 = vpack.c.b16 %v1856, %v1855
    %v1926 = vpack.c.b16 %v1858, %v1857
    %v1927 = vpack.c.b16 %v1860, %v1859
    %v1928 = vpack.c.b16 %v1862, %v1861
    %v1929 = vpack.c.b16 %v1864, %v1863
    %v1930 = vpack.c.b16 %v1866, %v1865
    %1995 = vmatprep.subr.bf16.mxu0 0
    %1996 = vmatpush1.bf16.msra.mxu0 %v1867
    %1997 = vmatprep.subr.bf16.mxu0 0
    %1998 = vmatpush1.bf16.msra.mxu0 %v1868
    %1999 = vmatprep.subr.bf16.mxu0 0
    %2000 = vmatpush1.bf16.msra.mxu0 %v1869
    %2001 = vmatprep.subr.bf16.mxu0 0
    %2002 = vmatpush1.bf16.msra.mxu0 %v1870
    %2003 = vmatprep.subr.bf16.mxu0 0
    %2004 = vmatpush1.bf16.msra.mxu0 %v1871
    %2005 = vmatprep.subr.bf16.mxu0 0
    %2006 = vmatpush1.bf16.msra.mxu0 %v1872
    %2007 = vmatprep.subr.bf16.mxu0 0
    %2008 = vmatpush1.bf16.msra.mxu0 %v1873
    %2009 = vmatprep.subr.bf16.mxu0 0
    %2010 = vmatpush1.bf16.msra.mxu0 %v1874
    %2011 = vmatprep.subr.bf16.mxu0 0
    %2012 = vmatpush1.bf16.msra.mxu0 %v1875
    %2013 = vmatprep.subr.bf16.mxu0 0
    %2014 = vmatpush1.bf16.msra.mxu0 %v1876
    %2015 = vmatprep.subr.bf16.mxu0 0
    %2016 = vmatpush1.bf16.msra.mxu0 %v1877
    %2017 = vmatprep.subr.bf16.mxu0 0
    %2018 = vmatpush1.bf16.msra.mxu0 %v1878
    %2019 = vmatprep.subr.bf16.mxu0 0
    %2020 = vmatpush1.bf16.msra.mxu0 %v1879
    %2021 = vmatprep.subr.bf16.mxu0 0
    %2022 = vmatpush1.bf16.msra.mxu0 %v1880
    %2023 = vmatprep.subr.bf16.mxu0 0
    %2024 = vmatpush1.bf16.msra.mxu0 %v1881
    %2025 = vmatprep.subr.bf16.mxu0 0
    %2026 = vmatpush1.bf16.msra.mxu0 %v1882
    %2027 = vmatprep.mubr.bf16.mxu0 %v1476
    %2028 = vmatmul.mubr.bf16.gmra.mrb[0].mxu0 %v1475
    %v2029 = vpop.f32.mrb[0].mxu0
    %v2030 = vadd.f32 0.0, %v2029
    %v2031 = vpop.f32.mrb[0].mxu0
    %v2032 = vpop.f32.mrb[0].mxu0
    %v2033 = vpop.f32.mrb[0].mxu0
    %2034 = vdwg.mxu0
    %2035 = vmatprep.subr.bf16.mxu0 0
    %2036 = vmatpush1.bf16.msra.mxu0 %v1883
    %2037 = vmatprep.subr.bf16.mxu0 0
    %2038 = vmatpush1.bf16.msra.mxu0 %v1884
    %2039 = vmatprep.subr.bf16.mxu0 0
    %2040 = vmatpush1.bf16.msra.mxu0 %v1885
    %2041 = vmatprep.subr.bf16.mxu0 0
    %2042 = vmatpush1.bf16.msra.mxu0 %v1886
    %2043 = vmatprep.subr.bf16.mxu0 0
    %2044 = vmatpush1.bf16.msra.mxu0 %v1887
    %2045 = vmatprep.subr.bf16.mxu0 0
    %2046 = vmatpush1.bf16.msra.mxu0 %v1888
    %2047 = vmatprep.subr.bf16.mxu0 0
    %2048 = vmatpush1.bf16.msra.mxu0 %v1889
    %2049 = vmatprep.subr.bf16.mxu0 0
    %2050 = vmatpush1.bf16.msra.mxu0 %v1890
    %2051 = vmatprep.subr.bf16.mxu0 0
    %2052 = vmatpush1.bf16.msra.mxu0 %v1891
    %2053 = vmatprep.subr.bf16.mxu0 0
    %2054 = vmatpush1.bf16.msra.mxu0 %v1892
    %2055 = vmatprep.subr.bf16.mxu0 0
    %2056 = vmatpush1.bf16.msra.mxu0 %v1893
    %2057 = vmatprep.subr.bf16.mxu0 0
    %2058 = vmatpush1.bf16.msra.mxu0 %v1894
    %2059 = vmatprep.subr.bf16.mxu0 0
    %2060 = vmatpush1.bf16.msra.mxu0 %v1895
    %2061 = vmatprep.subr.bf16.mxu0 0
    %2062 = vmatpush1.bf16.msra.mxu0 %v1896
    %2063 = vmatprep.subr.bf16.mxu0 0
    %2064 = vmatpush1.bf16.msra.mxu0 %v1897
    %2065 = vmatprep.subr.bf16.mxu0 0
    %2066 = vmatpush1.bf16.msra.mxu0 %v1898
    %2067 = vmatprep.mubr.bf16.mxu0 %v1478
    %2068 = vmatmul.mubr.bf16.gmra.mrb[0].mxu0 %v1477
    %v2069 = vpop.f32.mrb[0].mxu0
    %v2070 = vadd.f32 %v2030, %v2069
    %v2071 = vpop.f32.mrb[0].mxu0
    %v2072 = vpop.f32.mrb[0].mxu0
    %v2073 = vpop.f32.mrb[0].mxu0
    %2074 = vdwg.mxu0
    %2075 = vmatprep.subr.bf16.mxu0 0
    %2076 = vmatpush1.bf16.msra.mxu0 %v1899
    %2077 = vmatprep.subr.bf16.mxu0 0
    %2078 = vmatpush1.bf16.msra.mxu0 %v1900
    %2079 = vmatprep.subr.bf16.mxu0 0
    %2080 = vmatpush1.bf16.msra.mxu0 %v1901
    %2081 = vmatprep.subr.bf16.mxu0 0
    %2082 = vmatpush1.bf16.msra.mxu0 %v1902
    %2083 = vmatprep.subr.bf16.mxu0 0
    %2084 = vmatpush1.bf16.msra.mxu0 %v1903
    %2085 = vmatprep.subr.bf16.mxu0 0
    %2086 = vmatpush1.bf16.msra.mxu0 %v1904
    %2087 = vmatprep.subr.bf16.mxu0 0
    %2088 = vmatpush1.bf16.msra.mxu0 %v1905
    %2089 = vmatprep.subr.bf16.mxu0 0
    %2090 = vmatpush1.bf16.msra.mxu0 %v1906
    %2091 = vmatprep.subr.bf16.mxu0 0
    %2092 = vmatpush1.bf16.msra.mxu0 %v1907
    %2093 = vmatprep.subr.bf16.mxu0 0
    %2094 = vmatpush1.bf16.msra.mxu0 %v1908
    %2095 = vmatprep.subr.bf16.mxu0 0
    %2096 = vmatpush1.bf16.msra.mxu0 %v1909
    %2097 = vmatprep.subr.bf16.mxu0 0
    %2098 = vmatpush1.bf16.msra.mxu0 %v1910
    %2099 = vmatprep.subr.bf16.mxu0 0
    %2100 = vmatpush1.bf16.msra.mxu0 %v1911
    %2101 = vmatprep.subr.bf16.mxu0 0
    %2102 = vmatpush1.bf16.msra.mxu0 %v1912
    %2103 = vmatprep.subr.bf16.mxu0 0
    %2104 = vmatpush1.bf16.msra.mxu0 %v1913
    %2105 = vmatprep.subr.bf16.mxu0 0
    %2106 = vmatpush1.bf16.msra.mxu0 %v1914
    %2107 = vmatprep.mubr.bf16.mxu0 %v1480
    %2108 = vmatmul.mubr.bf16.gmra.mrb[0].mxu0 %v1479
    %v2109 = vpop.f32.mrb[0].mxu0
    %v2110 = vadd.f32 %v2070, %v2109
    %v2111 = vpop.f32.mrb[0].mxu0
    %v2112 = vpop.f32.mrb[0].mxu0
    %v2113 = vpop.f32.mrb[0].mxu0
    %2114 = vdwg.mxu0
    %2115 = vmatprep.subr.bf16.mxu0 0
    %2116 = vmatpush1.bf16.msra.mxu0 %v1915
    %2117 = vmatprep.subr.bf16.mxu0 0
    %2118 = vmatpush1.bf16.msra.mxu0 %v1916
    %2119 = vmatprep.subr.bf16.mxu0 0
    %2120 = vmatpush1.bf16.msra.mxu0 %v1917
    %2121 = vmatprep.subr.bf16.mxu0 0
    %2122 = vmatpush1.bf16.msra.mxu0 %v1918
    %2123 = vmatprep.subr.bf16.mxu0 0
    %2124 = vmatpush1.bf16.msra.mxu0 %v1919
    %2125 = vmatprep.subr.bf16.mxu0 0
    %2126 = vmatpush1.bf16.msra.mxu0 %v1920
    %2127 = vmatprep.subr.bf16.mxu0 0
    %2128 = vmatpush1.bf16.msra.mxu0 %v1921
    %2129 = vmatprep.subr.bf16.mxu0 0
    %2130 = vmatpush1.bf16.msra.mxu0 %v1922
    %2131 = vmatprep.subr.bf16.mxu0 0
    %2132 = vmatpush1.bf16.msra.mxu0 %v1923
    %2133 = vmatprep.subr.bf16.mxu0 0
    %2134 = vmatpush1.bf16.msra.mxu0 %v1924
    %2135 = vmatprep.subr.bf16.mxu0 0
    %2136 = vmatpush1.bf16.msra.mxu0 %v1925
    %2137 = vmatprep.subr.bf16.mxu0 0
    %2138 = vmatpush1.bf16.msra.mxu0 %v1926
    %2139 = vmatprep.subr.bf16.mxu0 0
    %2140 = vmatpush1.bf16.msra.mxu0 %v1927
    %2141 = vmatprep.subr.bf16.mxu0 0
    %2142 = vmatpush1.bf16.msra.mxu0 %v1928
    %2143 = vmatprep.subr.bf16.mxu0 0
    %2144 = vmatpush1.bf16.msra.mxu0 %v1929
    %2145 = vmatprep.subr.bf16.mxu0 0
    %2146 = vmatpush1.bf16.msra.mxu0 %v1930
    %2147 = vmatprep.mubr.bf16.mxu0 %v1482
    %2148 = vmatmul.mubr.bf16.gmra.mrb[0].mxu0 %v1481
    %v2149 = vpop.f32.mrb[0].mxu0
    %v2150 = vadd.f32 %v2110, %v2149
    %v2151 = vpop.f32.mrb[0].mxu0
    %v2152 = vpop.f32.mrb[0].mxu0
    %v2153 = vpop.f32.mrb[0].mxu0
    %2154 = vdwg.mxu0
    %v2155 = vadd.f32 %v1462, %v2150
    %v2156 = vld [vmem:[#allocation2 + $0xc0] sm:$0xff]
    %v2157 = vld [vmem:[#allocation2 + $0xc8] sm:$0xff]
    %v2158 = vld [vmem:[#allocation2 + $0xd0] sm:$0xff]
    %v2159 = vld [vmem:[#allocation2 + $0xd8] sm:$0xff]
    %v2160 = vld [vmem:[#allocation2 + $0xe0] sm:$0xff]
    %v2161 = vld [vmem:[#allocation2 + $0xe8] sm:$0xff]
    %v2162 = vld [vmem:[#allocation2 + $0xf0] sm:$0xff]
    %v2163 = vpack.c.bf16 %v2156, %v2156
    %v2164 = vpack.c.bf16 %v2157, %v2157
    %v2165 = vpack.c.bf16 %v2158, %v2158
    %v2166 = vpack.c.bf16 %v2159, %v2159
    %v2167 = vpack.c.bf16 %v2160, %v2160
    %v2168 = vpack.c.bf16 %v2161, %v2161
    %v2169 = vpack.c.bf16 %v2162, %v2162
    %v2170 = vld [vmem:[#allocation4 + $0x600] sm:$0xf]
    %v2171 = vld [vmem:[#allocation4 + $0x604] sm:$0xf]
    %v2172 = vld [vmem:[#allocation4 + $0x608] sm:$0xf]
    %v2173 = vld [vmem:[#allocation4 + $0x60c] sm:$0xf]
    %v2174 = vld [vmem:[#allocation4 + $0x610] sm:$0xf]
    %v2175 = vld [vmem:[#allocation4 + $0x614] sm:$0xf]
    %v2176 = vld [vmem:[#allocation4 + $0x618] sm:$0xf]
    %v2177 = vld [vmem:[#allocation4 + $0x61c] sm:$0xf]
    %v2178 = vld [vmem:[#allocation4 + $0x620] sm:$0xf]
    %v2179 = vld [vmem:[#allocation4 + $0x624] sm:$0xf]
    %v2180 = vld [vmem:[#allocation4 + $0x628] sm:$0xf]
    %v2181 = vld [vmem:[#allocation4 + $0x62c] sm:$0xf]
    %v2182 = vld [vmem:[#allocation4 + $0x630] sm:$0xf]
    %v2183 = vld [vmem:[#allocation4 + $0x634] sm:$0xf]
    %v2184 = vld [vmem:[#allocation4 + $0x638] sm:$0xf]
    %v2185 = vld [vmem:[#allocation4 + $0x63c] sm:$0xf]
    %v2186 = vld [vmem:[#allocation4 + $0x640] sm:$0xf]
    %v2187 = vld [vmem:[#allocation4 + $0x644] sm:$0xf]
    %v2188 = vld [vmem:[#allocation4 + $0x648] sm:$0xf]
    %v2189 = vld [vmem:[#allocation4 + $0x64c] sm:$0xf]
    %v2190 = vld [vmem:[#allocation4 + $0x650] sm:$0xf]
    %v2191 = vld [vmem:[#allocation4 + $0x654] sm:$0xf]
    %v2192 = vld [vmem:[#allocation4 + $0x658] sm:$0xf]
    %v2193 = vld [vmem:[#allocation4 + $0x65c] sm:$0xf]
    %v2194 = vld [vmem:[#allocation4 + $0x660] sm:$0xf]
    %v2195 = vld [vmem:[#allocation4 + $0x664] sm:$0xf]
    %v2196 = vld [vmem:[#allocation4 + $0x668] sm:$0xf]
    %v2197 = vld [vmem:[#allocation4 + $0x66c] sm:$0xf]
    %v2198 = vld [vmem:[#allocation4 + $0x670] sm:$0xf]
    %v2199 = vld [vmem:[#allocation4 + $0x674] sm:$0xf]
    %v2200 = vld [vmem:[#allocation4 + $0x678] sm:$0xf]
    %v2201 = vld [vmem:[#allocation4 + $0x67c] sm:$0xf]
    %v2202 = vld [vmem:[#allocation4 + $0x680] sm:$0xf]
    %v2203 = vld [vmem:[#allocation4 + $0x684] sm:$0xf]
    %v2204 = vld [vmem:[#allocation4 + $0x688] sm:$0xf]
    %v2205 = vld [vmem:[#allocation4 + $0x68c] sm:$0xf]
    %v2206 = vld [vmem:[#allocation4 + $0x690] sm:$0xf]
    %v2207 = vld [vmem:[#allocation4 + $0x694] sm:$0xf]
    %v2208 = vld [vmem:[#allocation4 + $0x698] sm:$0xf]
    %v2209 = vld [vmem:[#allocation4 + $0x69c] sm:$0xf]
    %v2210 = vld [vmem:[#allocation4 + $0x6a0] sm:$0xf]
    %v2211 = vld [vmem:[#allocation4 + $0x6a4] sm:$0xf]
    %v2212 = vld [vmem:[#allocation4 + $0x6a8] sm:$0xf]
    %v2213 = vld [vmem:[#allocation4 + $0x6ac] sm:$0xf]
    %v2214 = vld [vmem:[#allocation4 + $0x6b0] sm:$0xf]
    %v2215 = vld [vmem:[#allocation4 + $0x6b4] sm:$0xf]
    %v2216 = vld [vmem:[#allocation4 + $0x6b8] sm:$0xf]
    %v2217 = vld [vmem:[#allocation4 + $0x6bc] sm:$0xf]
    %v2218 = vld [vmem:[#allocation4 + $0x6c0] sm:$0xf]
    %v2219 = vld [vmem:[#allocation4 + $0x6c4] sm:$0xf]
    %v2220 = vld [vmem:[#allocation4 + $0x6c8] sm:$0xf]
    %v2221 = vld [vmem:[#allocation4 + $0x6cc] sm:$0xf]
    %v2222 = vld [vmem:[#allocation4 + $0x6d0] sm:$0xf]
    %v2223 = vld [vmem:[#allocation4 + $0x6d4] sm:$0xf]
    %v2224 = vld [vmem:[#allocation4 + $0x6d8] sm:$0xf]
    %v2225 = vld [vmem:[#allocation4 + $0x6dc] sm:$0xf]
    %v2226 = vld [vmem:[#allocation4 + $0x6e0] sm:$0xf]
    %v2227 = vld [vmem:[#allocation4 + $0x6e4] sm:$0xf]
    %v2228 = vld [vmem:[#allocation4 + $0x6e8] sm:$0xf]
    %v2229 = vld [vmem:[#allocation4 + $0x6ec] sm:$0xf]
    %v2230 = vld [vmem:[#allocation4 + $0x6f0] sm:$0xf]
    %v2231 = vld [vmem:[#allocation4 + $0x6f4] sm:$0xf]
    %v2232 = vld [vmem:[#allocation4 + $0x6f8] sm:$0xf]
    %v2233 = vld [vmem:[#allocation4 + $0x6fc] sm:$0xf]
    %v2234 = vld [vmem:[#allocation4 + $0x700] sm:$0xf]
    %v2235 = vld [vmem:[#allocation4 + $0x704] sm:$0xf]
    %v2236 = vld [vmem:[#allocation4 + $0x708] sm:$0xf]
    %v2237 = vld [vmem:[#allocation4 + $0x70c] sm:$0xf]
    %v2238 = vld [vmem:[#allocation4 + $0x710] sm:$0xf]
    %v2239 = vld [vmem:[#allocation4 + $0x714] sm:$0xf]
    %v2240 = vld [vmem:[#allocation4 + $0x718] sm:$0xf]
    %v2241 = vld [vmem:[#allocation4 + $0x71c] sm:$0xf]
    %v2242 = vld [vmem:[#allocation4 + $0x720] sm:$0xf]
    %v2243 = vld [vmem:[#allocation4 + $0x724] sm:$0xf]
    %v2244 = vld [vmem:[#allocation4 + $0x728] sm:$0xf]
    %v2245 = vld [vmem:[#allocation4 + $0x72c] sm:$0xf]
    %v2246 = vld [vmem:[#allocation4 + $0x730] sm:$0xf]
    %v2247 = vld [vmem:[#allocation4 + $0x734] sm:$0xf]
    %v2248 = vld [vmem:[#allocation4 + $0x738] sm:$0xf]
    %v2249 = vld [vmem:[#allocation4 + $0x73c] sm:$0xf]
    %v2250 = vld [vmem:[#allocation4 + $0x740] sm:$0xf]
    %v2251 = vld [vmem:[#allocation4 + $0x744] sm:$0xf]
    %v2252 = vld [vmem:[#allocation4 + $0x748] sm:$0xf]
    %v2253 = vld [vmem:[#allocation4 + $0x74c] sm:$0xf]
    %v2254 = vld [vmem:[#allocation4 + $0x750] sm:$0xf]
    %v2255 = vld [vmem:[#allocation4 + $0x754] sm:$0xf]
    %v2256 = vld [vmem:[#allocation4 + $0x758] sm:$0xf]
    %v2257 = vld [vmem:[#allocation4 + $0x75c] sm:$0xf]
    %v2258 = vld [vmem:[#allocation4 + $0x760] sm:$0xf]
    %v2259 = vld [vmem:[#allocation4 + $0x764] sm:$0xf]
    %v2260 = vld [vmem:[#allocation4 + $0x768] sm:$0xf]
    %v2261 = vld [vmem:[#allocation4 + $0x76c] sm:$0xf]
    %v2262 = vld [vmem:[#allocation4 + $0x770] sm:$0xf]
    %v2263 = vld [vmem:[#allocation4 + $0x774] sm:$0xf]
    %v2264 = vld [vmem:[#allocation4 + $0x778] sm:$0xf]
    %v2265 = vld [vmem:[#allocation4 + $0x77c] sm:$0xf]
    %v2266 = vld [vmem:[#allocation4 + $0x780] sm:$0xf]
    %v2267 = vld [vmem:[#allocation4 + $0x784] sm:$0xf]
    %v2268 = vld [vmem:[#allocation4 + $0x788] sm:$0xf]
    %v2269 = vld [vmem:[#allocation4 + $0x78c] sm:$0xf]
    %v2270 = vld [vmem:[#allocation4 + $0x790] sm:$0xf]
    %v2271 = vld [vmem:[#allocation4 + $0x794] sm:$0xf]
    %v2272 = vld [vmem:[#allocation4 + $0x798] sm:$0xf]
    %v2273 = vld [vmem:[#allocation4 + $0x79c] sm:$0xf]
    %v2378 = vunpack.c.l.b16 %v2170
    %v2379 = vunpack.c.l.b16 %v2171
    %v2380 = vunpack.c.l.b16 %v2172
    %v2381 = vunpack.c.l.b16 %v2173
    %v2382 = vunpack.c.l.b16 %v2174
    %v2383 = vunpack.c.l.b16 %v2175
    %v2384 = vunpack.c.l.b16 %v2176
    %v2385 = vunpack.c.l.b16 %v2177
    %v2386 = vunpack.c.l.b16 %v2178
    %v2387 = vunpack.c.l.b16 %v2179
    %v2388 = vunpack.c.l.b16 %v2180
    %v2389 = vunpack.c.l.b16 %v2181
    %v2390 = vunpack.c.l.b16 %v2182
    %v2391 = vunpack.c.l.b16 %v2183
    %v2392 = vunpack.c.l.b16 %v2184
    %v2393 = vunpack.c.l.b16 %v2185
    %v2394 = vunpack.c.l.b16 %v2186
    %v2395 = vunpack.c.l.b16 %v2187
    %v2396 = vunpack.c.l.b16 %v2188
    %v2397 = vunpack.c.l.b16 %v2189
    %v2398 = vunpack.c.l.b16 %v2190
    %v2399 = vunpack.c.l.b16 %v2191
    %v2400 = vunpack.c.l.b16 %v2192
    %v2401 = vunpack.c.l.b16 %v2193
    %v2402 = vunpack.c.l.b16 %v2194
    %v2403 = vunpack.c.l.b16 %v2195
    %v2404 = vunpack.c.l.b16 %v2196
    %v2405 = vunpack.c.l.b16 %v2197
    %v2406 = vunpack.c.l.b16 %v2198
    %v2407 = vunpack.c.l.b16 %v2199
    %v2408 = vunpack.c.l.b16 %v2200
    %v2409 = vunpack.c.l.b16 %v2201
    %v2410 = vunpack.c.l.b16 %v2202
    %v2411 = vunpack.c.l.b16 %v2203
    %v2412 = vunpack.c.l.b16 %v2204
    %v2413 = vunpack.c.l.b16 %v2205
    %v2414 = vunpack.c.l.b16 %v2206
    %v2415 = vunpack.c.l.b16 %v2207
    %v2416 = vunpack.c.l.b16 %v2208
    %v2417 = vunpack.c.l.b16 %v2209
    %v2418 = vunpack.c.l.b16 %v2210
    %v2419 = vunpack.c.l.b16 %v2211
    %v2420 = vunpack.c.l.b16 %v2212
    %v2421 = vunpack.c.l.b16 %v2213
    %v2422 = vunpack.c.l.b16 %v2214
    %v2423 = vunpack.c.l.b16 %v2215
    %v2424 = vunpack.c.l.b16 %v2216
    %v2425 = vunpack.c.l.b16 %v2217
    %v2426 = vunpack.c.l.b16 %v2218
    %v2427 = vunpack.c.l.b16 %v2219
    %v2428 = vunpack.c.l.b16 %v2220
    %v2429 = vunpack.c.l.b16 %v2221
    %v2430 = vunpack.c.l.b16 %v2222
    %v2431 = vunpack.c.l.b16 %v2223
    %v2432 = vunpack.c.l.b16 %v2224
    %v2433 = vunpack.c.l.b16 %v2225
    %v2434 = vunpack.c.l.b16 %v2226
    %v2435 = vunpack.c.l.b16 %v2227
    %v2436 = vunpack.c.l.b16 %v2228
    %v2437 = vunpack.c.l.b16 %v2229
    %v2438 = vunpack.c.l.b16 %v2230
    %v2439 = vunpack.c.l.b16 %v2231
    %v2440 = vunpack.c.l.b16 %v2232
    %v2441 = vunpack.c.l.b16 %v2233
    %v2442 = vunpack.c.l.b16 %v2234
    %v2443 = vunpack.c.l.b16 %v2235
    %v2444 = vunpack.c.l.b16 %v2236
    %v2445 = vunpack.c.l.b16 %v2237
    %v2446 = vunpack.c.l.b16 %v2238
    %v2447 = vunpack.c.l.b16 %v2239
    %v2448 = vunpack.c.l.b16 %v2240
    %v2449 = vunpack.c.l.b16 %v2241
    %v2450 = vunpack.c.l.b16 %v2242
    %v2451 = vunpack.c.l.b16 %v2243
    %v2452 = vunpack.c.l.b16 %v2244
    %v2453 = vunpack.c.l.b16 %v2245
    %v2454 = vunpack.c.l.b16 %v2246
    %v2455 = vunpack.c.l.b16 %v2247
    %v2456 = vunpack.c.l.b16 %v2248
    %v2457 = vunpack.c.l.b16 %v2249
    %v2458 = vunpack.c.l.b16 %v2250
    %v2459 = vunpack.c.l.b16 %v2251
    %v2460 = vunpack.c.l.b16 %v2252
    %v2461 = vunpack.c.l.b16 %v2253
    %v2462 = vunpack.c.l.b16 %v2254
    %v2463 = vunpack.c.l.b16 %v2255
    %v2464 = vunpack.c.l.b16 %v2256
    %v2465 = vunpack.c.l.b16 %v2257
    %v2466 = vunpack.c.l.b16 %v2258
    %v2467 = vunpack.c.l.b16 %v2259
    %v2468 = vunpack.c.l.b16 %v2260
    %v2469 = vunpack.c.l.b16 %v2261
    %v2470 = vunpack.c.l.b16 %v2262
    %v2471 = vunpack.c.l.b16 %v2263
    %v2472 = vunpack.c.l.b16 %v2264
    %v2473 = vunpack.c.l.b16 %v2265
    %v2474 = vunpack.c.l.b16 %v2266
    %v2475 = vunpack.c.l.b16 %v2267
    %v2476 = vunpack.c.l.b16 %v2268
    %v2477 = vunpack.c.l.b16 %v2269
    %v2478 = vunpack.c.l.b16 %v2270
    %v2479 = vunpack.c.l.b16 %v2271
    %v2480 = vunpack.c.l.b16 %v2272
    %v2481 = vunpack.c.l.b16 %v2273
    %v2482 = vpack.c.b16 %v2379, %v2378
    %v2483 = vpack.c.b16 %v2381, %v2380
    %v2484 = vpack.c.b16 %v2383, %v2382
    %v2485 = vpack.c.b16 %v2385, %v2384
    %v2486 = vpack.c.b16 %v2387, %v2386
    %v2487 = vpack.c.b16 %v2389, %v2388
    %v2488 = vpack.c.b16 %v2391, %v2390
    %v2489 = vpack.c.b16 %v2393, %v2392
    %v2490 = vpack.c.b16 %v2395, %v2394
    %v2491 = vpack.c.b16 %v2397, %v2396
    %v2492 = vpack.c.b16 %v2399, %v2398
    %v2493 = vpack.c.b16 %v2401, %v2400
    %v2494 = vpack.c.b16 %v2403, %v2402
    %v2495 = vpack.c.b16 %v2405, %v2404
    %v2496 = vpack.c.b16 %v2407, %v2406
    %v2497 = vpack.c.b16 %v2409, %v2408
    %v2498 = vpack.c.b16 %v2411, %v2410
    %v2499 = vpack.c.b16 %v2413, %v2412
    %v2500 = vpack.c.b16 %v2415, %v2414
    %v2501 = vpack.c.b16 %v2417, %v2416
    %v2502 = vpack.c.b16 %v2419, %v2418
    %v2503 = vpack.c.b16 %v2421, %v2420
    %v2504 = vpack.c.b16 %v2423, %v2422
    %v2505 = vpack.c.b16 %v2425, %v2424
    %v2506 = vpack.c.b16 %v2427, %v2426
    %v2507 = vpack.c.b16 %v2429, %v2428
    %v2508 = vpack.c.b16 %v2431, %v2430
    %v2509 = vpack.c.b16 %v2433, %v2432
    %v2510 = vpack.c.b16 %v2435, %v2434
    %v2511 = vpack.c.b16 %v2437, %v2436
    %v2512 = vpack.c.b16 %v2439, %v2438
    %v2513 = vpack.c.b16 %v2441, %v2440
    %v2514 = vpack.c.b16 %v2443, %v2442
    %v2515 = vpack.c.b16 %v2445, %v2444
    %v2516 = vpack.c.b16 %v2447, %v2446
    %v2517 = vpack.c.b16 %v2449, %v2448
    %v2518 = vpack.c.b16 %v2451, %v2450
    %v2519 = vpack.c.b16 %v2453, %v2452
    %v2520 = vpack.c.b16 %v2455, %v2454
    %v2521 = vpack.c.b16 %v2457, %v2456
    %v2522 = vpack.c.b16 %v2459, %v2458
    %v2523 = vpack.c.b16 %v2461, %v2460
    %v2524 = vpack.c.b16 %v2463, %v2462
    %v2525 = vpack.c.b16 %v2465, %v2464
    %v2526 = vpack.c.b16 %v2467, %v2466
    %v2527 = vpack.c.b16 %v2469, %v2468
    %v2528 = vpack.c.b16 %v2471, %v2470
    %v2529 = vpack.c.b16 %v2473, %v2472
    %v2530 = vpack.c.b16 %v2475, %v2474
    %v2531 = vpack.c.b16 %v2477, %v2476
    %v2532 = vpack.c.b16 %v2479, %v2478
    %v2533 = vpack.c.b16 %v2481, %v2480
    %vm2586 = vcmask 523264
    %v2588 = vsel %vm2586, %v2169, 0
    %2590 = vmatprep.subr.bf16.mxu0 0
    %2591 = vmatpush1.bf16.msra.mxu0 %v2482
    %2592 = vmatprep.subr.bf16.mxu0 0
    %2593 = vmatpush1.bf16.msra.mxu0 %v2483
    %2594 = vmatprep.subr.bf16.mxu0 0
    %2595 = vmatpush1.bf16.msra.mxu0 %v2484
    %2596 = vmatprep.subr.bf16.mxu0 0
    %2597 = vmatpush1.bf16.msra.mxu0 %v2485
    %2598 = vmatprep.subr.bf16.mxu0 0
    %2599 = vmatpush1.bf16.msra.mxu0 %v2486
    %2600 = vmatprep.subr.bf16.mxu0 0
    %2601 = vmatpush1.bf16.msra.mxu0 %v2487
    %2602 = vmatprep.subr.bf16.mxu0 0
    %2603 = vmatpush1.bf16.msra.mxu0 %v2488
    %2604 = vmatprep.subr.bf16.mxu0 0
    %2605 = vmatpush1.bf16.msra.mxu0 %v2489
    %2606 = vmatprep.subr.bf16.mxu0 0
    %2607 = vmatpush1.bf16.msra.mxu0 %v2490
    %2608 = vmatprep.subr.bf16.mxu0 0
    %2609 = vmatpush1.bf16.msra.mxu0 %v2491
    %2610 = vmatprep.subr.bf16.mxu0 0
    %2611 = vmatpush1.bf16.msra.mxu0 %v2492
    %2612 = vmatprep.subr.bf16.mxu0 0
    %2613 = vmatpush1.bf16.msra.mxu0 %v2493
    %2614 = vmatprep.subr.bf16.mxu0 0
    %2615 = vmatpush1.bf16.msra.mxu0 %v2494
    %2616 = vmatprep.subr.bf16.mxu0 0
    %2617 = vmatpush1.bf16.msra.mxu0 %v2495
    %2618 = vmatprep.subr.bf16.mxu0 0
    %2619 = vmatpush1.bf16.msra.mxu0 %v2496
    %2620 = vmatprep.subr.bf16.mxu0 0
    %2621 = vmatpush1.bf16.msra.mxu0 %v2497
    %2622 = vmatprep.mubr.bf16.mxu0 %v2164
    %2623 = vmatmul.mubr.bf16.gmra.mrb[0].mxu0 %v2163
    %v2624 = vpop.f32.mrb[0].mxu0
    %v2625 = vadd.f32 0.0, %v2624
    %v2626 = vpop.f32.mrb[0].mxu0
    %v2627 = vpop.f32.mrb[0].mxu0
    %v2628 = vpop.f32.mrb[0].mxu0
    %2629 = vdwg.mxu0
    %2630 = vmatprep.subr.bf16.mxu0 0
    %2631 = vmatpush1.bf16.msra.mxu0 %v2498
    %2632 = vmatprep.subr.bf16.mxu0 0
    %2633 = vmatpush1.bf16.msra.mxu0 %v2499
    %2634 = vmatprep.subr.bf16.mxu0 0
    %2635 = vmatpush1.bf16.msra.mxu0 %v2500
    %2636 = vmatprep.subr.bf16.mxu0 0
    %2637 = vmatpush1.bf16.msra.mxu0 %v2501
    %2638 = vmatprep.subr.bf16.mxu0 0
    %2639 = vmatpush1.bf16.msra.mxu0 %v2502
    %2640 = vmatprep.subr.bf16.mxu0 0
    %2641 = vmatpush1.bf16.msra.mxu0 %v2503
    %2642 = vmatprep.subr.bf16.mxu0 0
    %2643 = vmatpush1.bf16.msra.mxu0 %v2504
    %2644 = vmatprep.subr.bf16.mxu0 0
    %2645 = vmatpush1.bf16.msra.mxu0 %v2505
    %2646 = vmatprep.subr.bf16.mxu0 0
    %2647 = vmatpush1.bf16.msra.mxu0 %v2506
    %2648 = vmatprep.subr.bf16.mxu0 0
    %2649 = vmatpush1.bf16.msra.mxu0 %v2507
    %2650 = vmatprep.subr.bf16.mxu0 0
    %2651 = vmatpush1.bf16.msra.mxu0 %v2508
    %2652 = vmatprep.subr.bf16.mxu0 0
    %2653 = vmatpush1.bf16.msra.mxu0 %v2509
    %2654 = vmatprep.subr.bf16.mxu0 0
    %2655 = vmatpush1.bf16.msra.mxu0 %v2510
    %2656 = vmatprep.subr.bf16.mxu0 0
    %2657 = vmatpush1.bf16.msra.mxu0 %v2511
    %2658 = vmatprep.subr.bf16.mxu0 0
    %2659 = vmatpush1.bf16.msra.mxu0 %v2512
    %2660 = vmatprep.subr.bf16.mxu0 0
    %2661 = vmatpush1.bf16.msra.mxu0 %v2513
    %2662 = vmatprep.mubr.bf16.mxu0 %v2166
    %2663 = vmatmul.mubr.bf16.gmra.mrb[0].mxu0 %v2165
    %v2664 = vpop.f32.mrb[0].mxu0
    %v2665 = vadd.f32 %v2625, %v2664
    %v2666 = vpop.f32.mrb[0].mxu0
    %v2667 = vpop.f32.mrb[0].mxu0
    %v2668 = vpop.f32.mrb[0].mxu0
    %2669 = vdwg.mxu0
    %2670 = vmatprep.subr.bf16.mxu0 0
    %2671 = vmatpush1.bf16.msra.mxu0 %v2514
    %2672 = vmatprep.subr.bf16.mxu0 0
    %2673 = vmatpush1.bf16.msra.mxu0 %v2515
    %2674 = vmatprep.subr.bf16.mxu0 0
    %2675 = vmatpush1.bf16.msra.mxu0 %v2516
    %2676 = vmatprep.subr.bf16.mxu0 0
    %2677 = vmatpush1.bf16.msra.mxu0 %v2517
    %2678 = vmatprep.subr.bf16.mxu0 0
    %2679 = vmatpush1.bf16.msra.mxu0 %v2518
    %2680 = vmatprep.subr.bf16.mxu0 0
    %2681 = vmatpush1.bf16.msra.mxu0 %v2519
    %2682 = vmatprep.subr.bf16.mxu0 0
    %2683 = vmatpush1.bf16.msra.mxu0 %v2520
    %2684 = vmatprep.subr.bf16.mxu0 0
    %2685 = vmatpush1.bf16.msra.mxu0 %v2521
    %2686 = vmatprep.subr.bf16.mxu0 0
    %2687 = vmatpush1.bf16.msra.mxu0 %v2522
    %2688 = vmatprep.subr.bf16.mxu0 0
    %2689 = vmatpush1.bf16.msra.mxu0 %v2523
    %2690 = vmatprep.subr.bf16.mxu0 0
    %2691 = vmatpush1.bf16.msra.mxu0 %v2524
    %2692 = vmatprep.subr.bf16.mxu0 0
    %2693 = vmatpush1.bf16.msra.mxu0 %v2525
    %2694 = vmatprep.subr.bf16.mxu0 0
    %2695 = vmatpush1.bf16.msra.mxu0 %v2526
    %2696 = vmatprep.subr.bf16.mxu0 0
    %2697 = vmatpush1.bf16.msra.mxu0 %v2527
    %2698 = vmatprep.subr.bf16.mxu0 0
    %2699 = vmatpush1.bf16.msra.mxu0 %v2528
    %2700 = vmatprep.subr.bf16.mxu0 0
    %2701 = vmatpush1.bf16.msra.mxu0 %v2529
    %2702 = vmatprep.mubr.bf16.mxu0 %v2168
    %2703 = vmatmul.mubr.bf16.gmra.mrb[0].mxu0 %v2167
    %v2704 = vpop.f32.mrb[0].mxu0
    %v2705 = vadd.f32 %v2665, %v2704
    %v2706 = vpop.f32.mrb[0].mxu0
    %v2707 = vpop.f32.mrb[0].mxu0
    %v2708 = vpop.f32.mrb[0].mxu0
    %2709 = vdwg.mxu0
    %2710 = vmatprep.subr.bf16.mxu0 0
    %2711 = vmatpush1.bf16.msra.mxu0 %v2530
    %2712 = vmatprep.subr.bf16.mxu0 0
    %2713 = vmatpush1.bf16.msra.mxu0 %v2531
    %2714 = vmatprep.subr.bf16.mxu0 0
    %2715 = vmatpush1.bf16.msra.mxu0 %v2532
    %2716 = vmatprep.subr.bf16.mxu0 0
    %2717 = vmatpush1.bf16.msra.mxu0 %v2533
    %2718 = vmatprep.subr.bf16.mxu0 0
    %2719 = vmatpush1.bf16.msra.mxu0 0
    %2720 = vmatprep.subr.bf16.mxu0 0
    %2721 = vmatpush1.bf16.msra.mxu0 0
    %2722 = vmatprep.subr.bf16.mxu0 0
    %2723 = vmatpush1.bf16.msra.mxu0 0
    %2724 = vmatprep.subr.bf16.mxu0 0
    %2725 = vmatpush1.bf16.msra.mxu0 0
    %2726 = vmatprep.subr.bf16.mxu0 0
    %2727 = vmatpush1.bf16.msra.mxu0 0
    %2728 = vmatprep.subr.bf16.mxu0 0
    %2729 = vmatpush1.bf16.msra.mxu0 0
    %2730 = vmatprep.subr.bf16.mxu0 0
    %2731 = vmatpush1.bf16.msra.mxu0 0
    %2732 = vmatprep.subr.bf16.mxu0 0
    %2733 = vmatpush1.bf16.msra.mxu0 0
    %2734 = vmatprep.subr.bf16.mxu0 0
    %2735 = vmatpush1.bf16.msra.mxu0 0
    %2736 = vmatprep.subr.bf16.mxu0 0
    %2737 = vmatpush1.bf16.msra.mxu0 0
    %2738 = vmatprep.subr.bf16.mxu0 0
    %2739 = vmatpush1.bf16.msra.mxu0 0
    %2740 = vmatprep.subr.bf16.mxu0 0
    %2741 = vmatpush1.bf16.msra.mxu0 0
    %2742 = vmatprep.mubr.bf16.mxu0 0
    %2743 = vmatmul.mubr.bf16.gmra.mrb[0].mxu0 %v2588
    %v2744 = vpop.f32.mrb[0].mxu0
    %v2745 = vadd.f32 %v2705, %v2744
    %v2746 = vpop.f32.mrb[0].mxu0
    %v2747 = vpop.f32.mrb[0].mxu0
    %v2748 = vpop.f32.mrb[0].mxu0
    %2749 = vdwg.mxu0
    %v2750 = vadd.f32 %v2155, %v2745
    %v2751 = vlaneseq
    %v2752 = vshrl.u32 %v2751, 7
    %v2753 = vsub.s32 0, %v2752
    %v2754 = vrot.slane %v90, %v2753
    %v2755 = vadd.f32 %v2750, %v2754
    %v2756 = vpack.c.bf16 %v2755, %v2755
    %v2757 = vld [vmem:[#allocation6] sm:$0xf]
    %v2758 = vld [vmem:[#allocation6 + $0x4] sm:$0xf]
    %v2759 = vld [vmem:[#allocation6 + $0x8] sm:$0xf]
    %v2760 = vld [vmem:[#allocation6 + $0xc] sm:$0xf]
    %v2761 = vld [vmem:[#allocation6 + $0x10] sm:$0xf]
    %v2762 = vld [vmem:[#allocation6 + $0x14] sm:$0xf]
    %v2763 = vld [vmem:[#allocation6 + $0x18] sm:$0xf]
    %v2764 = vld [vmem:[#allocation6 + $0x1c] sm:$0xf]
    %v2765 = vld [vmem:[#allocation6 + $0x20] sm:$0xf]
    %v2766 = vld [vmem:[#allocation6 + $0x24] sm:$0xf]
    %v2767 = vld [vmem:[#allocation6 + $0x28] sm:$0xf]
    %v2768 = vld [vmem:[#allocation6 + $0x2c] sm:$0xf]
    %v2769 = vld [vmem:[#allocation6 + $0x30] sm:$0xf]
    %v2770 = vld [vmem:[#allocation6 + $0x34] sm:$0xf]
    %v2771 = vld [vmem:[#allocation6 + $0x38] sm:$0xf]
    %v2772 = vld [vmem:[#allocation6 + $0x3c] sm:$0xf]
    %v2773 = vlaneseq
    %v2774 = vshrl.u32 %v2773, 7
    %v2775 = vsub.s32 1, %v2774
    %v2776 = vrot.slane %v90, %v2775
    %v2793 = vunpack.c.l.b16 %v2757
    %v2794 = vunpack.c.l.b16 %v2758
    %v2795 = vunpack.c.l.b16 %v2759
    %v2796 = vunpack.c.l.b16 %v2760
    %v2797 = vunpack.c.l.b16 %v2761
    %v2798 = vunpack.c.l.b16 %v2762
    %v2799 = vunpack.c.l.b16 %v2763
    %v2800 = vunpack.c.l.b16 %v2764
    %v2801 = vunpack.c.l.b16 %v2765
    %v2802 = vunpack.c.l.b16 %v2766
    %v2803 = vunpack.c.l.b16 %v2767
    %v2804 = vunpack.c.l.b16 %v2768
    %v2805 = vunpack.c.l.b16 %v2769
    %v2806 = vunpack.c.l.b16 %v2770
    %v2807 = vunpack.c.l.b16 %v2771
    %v2808 = vunpack.c.l.b16 %v2772
    %v2809 = vpack.c.b16 %v2794, %v2793
    %v2810 = vpack.c.b16 %v2796, %v2795
    %v2811 = vpack.c.b16 %v2798, %v2797
    %v2812 = vpack.c.b16 %v2800, %v2799
    %v2813 = vpack.c.b16 %v2802, %v2801
    %v2814 = vpack.c.b16 %v2804, %v2803
    %v2815 = vpack.c.b16 %v2806, %v2805
    %v2816 = vpack.c.b16 %v2808, %v2807
    %2825 = vmatprep.subr.bf16.mxu0 0
    %2826 = vmatpush1.bf16.msra.mxu0 %v2809
    %2827 = vmatprep.subr.bf16.mxu0 0
    %2828 = vmatpush1.bf16.msra.mxu0 %v2810
    %2829 = vmatprep.subr.bf16.mxu0 0
    %2830 = vmatpush1.bf16.msra.mxu0 %v2811
    %2831 = vmatprep.subr.bf16.mxu0 0
    %2832 = vmatpush1.bf16.msra.mxu0 %v2812
    %2833 = vmatprep.subr.bf16.mxu0 0
    %2834 = vmatpush1.bf16.msra.mxu0 %v2813
    %2835 = vmatprep.subr.bf16.mxu0 0
    %2836 = vmatpush1.bf16.msra.mxu0 %v2814
    %2837 = vmatprep.subr.bf16.mxu0 0
    %2838 = vmatpush1.bf16.msra.mxu0 %v2815
    %2839 = vmatprep.subr.bf16.mxu0 0
    %2840 = vmatpush1.bf16.msra.mxu0 %v2816
    %2841 = vmatprep.subr.bf16.mxu0 0
    %2842 = vmatpush1.bf16.msra.mxu0 0
    %2843 = vmatprep.subr.bf16.mxu0 0
    %2844 = vmatpush1.bf16.msra.mxu0 0
    %2845 = vmatprep.subr.bf16.mxu0 0
    %2846 = vmatpush1.bf16.msra.mxu0 0
    %2847 = vmatprep.subr.bf16.mxu0 0
    %2848 = vmatpush1.bf16.msra.mxu0 0
    %2849 = vmatprep.subr.bf16.mxu0 0
    %2850 = vmatpush1.bf16.msra.mxu0 0
    %2851 = vmatprep.subr.bf16.mxu0 0
    %2852 = vmatpush1.bf16.msra.mxu0 0
    %2853 = vmatprep.subr.bf16.mxu0 0
    %2854 = vmatpush1.bf16.msra.mxu0 0
    %2855 = vmatprep.subr.bf16.mxu0 0
    %2856 = vmatpush1.bf16.msra.mxu0 0
    %2857 = vmatprep.mubr.bf16.mxu0 0
    %2858 = vmatmul.mubr.bf16.gmra.mrb[0].mxu0 %v2756
    %v2859 = vpop.f32.mrb[0].mxu0
    %v2860 = vadd.f32 %v2776, %v2859
    %v2861 = vpop.f32.mrb[0].mxu0
    %v2862 = vpop.f32.mrb[0].mxu0
    %v2863 = vpop.f32.mrb[0].mxu0
    %2864 = vdwg.mxu0
    %v2865 = vpack.c.bf16 %v2860, %v2860
    %v2866 = vld [vmem:[#allocation7] sm:$0xf]
    %v2867 = vld [vmem:[#allocation7 + $0x4] sm:$0xf]
    %v2868 = vld [vmem:[#allocation7 + $0x8] sm:$0xf]
    %v2869 = vld [vmem:[#allocation7 + $0xc] sm:$0xf]
    %v2870 = vld [vmem:[#allocation7 + $0x10] sm:$0xf]
    %v2871 = vld [vmem:[#allocation7 + $0x14] sm:$0xf]
    %v2872 = vld [vmem:[#allocation7 + $0x18] sm:$0xf]
    %v2873 = vld [vmem:[#allocation7 + $0x1c] sm:$0xf]
    %v2874 = vld [vmem:[#allocation7 + $0x20] sm:$0xf]
    %v2875 = vld [vmem:[#allocation7 + $0x24] sm:$0xf]
    %v2876 = vld [vmem:[#allocation7 + $0x28] sm:$0xf]
    %v2877 = vld [vmem:[#allocation7 + $0x2c] sm:$0xf]
    %v2878 = vld [vmem:[#allocation7 + $0x30] sm:$0xf]
    %v2879 = vld [vmem:[#allocation7 + $0x34] sm:$0xf]
    %v2880 = vld [vmem:[#allocation7 + $0x38] sm:$0xf]
    %v2881 = vld [vmem:[#allocation7 + $0x3c] sm:$0xf]
    %v2882 = vlaneseq
    %v2883 = vshrl.u32 %v2882, 7
    %v2884 = vsub.s32 2, %v2883
    %v2885 = vrot.slane %v90, %v2884
    %v2902 = vunpack.c.l.b16 %v2866
    %v2903 = vunpack.c.l.b16 %v2867
    %v2904 = vunpack.c.l.b16 %v2868
    %v2905 = vunpack.c.l.b16 %v2869
    %v2906 = vunpack.c.l.b16 %v2870
    %v2907 = vunpack.c.l.b16 %v2871
    %v2908 = vunpack.c.l.b16 %v2872
    %v2909 = vunpack.c.l.b16 %v2873
    %v2910 = vunpack.c.l.b16 %v2874
    %v2911 = vunpack.c.l.b16 %v2875
    %v2912 = vunpack.c.l.b16 %v2876
    %v2913 = vunpack.c.l.b16 %v2877
    %v2914 = vunpack.c.l.b16 %v2878
    %v2915 = vunpack.c.l.b16 %v2879
    %v2916 = vunpack.c.l.b16 %v2880
    %v2917 = vunpack.c.l.b16 %v2881
    %v2918 = vpack.c.b16 %v2903, %v2902
    %v2919 = vpack.c.b16 %v2905, %v2904
    %v2920 = vpack.c.b16 %v2907, %v2906
    %v2921 = vpack.c.b16 %v2909, %v2908
    %v2922 = vpack.c.b16 %v2911, %v2910
    %v2923 = vpack.c.b16 %v2913, %v2912
    %v2924 = vpack.c.b16 %v2915, %v2914
    %v2925 = vpack.c.b16 %v2917, %v2916
    %2934 = vmatprep.subr.bf16.mxu0 0
    %2935 = vmatpush1.bf16.msra.mxu0 %v2918
    %2936 = vmatprep.subr.bf16.mxu0 0
    %2937 = vmatpush1.bf16.msra.mxu0 %v2919
    %2938 = vmatprep.subr.bf16.mxu0 0
    %2939 = vmatpush1.bf16.msra.mxu0 %v2920
    %2940 = vmatprep.subr.bf16.mxu0 0
    %2941 = vmatpush1.bf16.msra.mxu0 %v2921
    %2942 = vmatprep.subr.bf16.mxu0 0
    %2943 = vmatpush1.bf16.msra.mxu0 %v2922
    %2944 = vmatprep.subr.bf16.mxu0 0
    %2945 = vmatpush1.bf16.msra.mxu0 %v2923
    %2946 = vmatprep.subr.bf16.mxu0 0
    %2947 = vmatpush1.bf16.msra.mxu0 %v2924
    %2948 = vmatprep.subr.bf16.mxu0 0
    %2949 = vmatpush1.bf16.msra.mxu0 %v2925
    %2950 = vmatprep.subr.bf16.mxu0 0
    %2951 = vmatpush1.bf16.msra.mxu0 0
    %2952 = vmatprep.subr.bf16.mxu0 0
    %2953 = vmatpush1.bf16.msra.mxu0 0
    %2954 = vmatprep.subr.bf16.mxu0 0
    %2955 = vmatpush1.bf16.msra.mxu0 0
    %2956 = vmatprep.subr.bf16.mxu0 0
    %2957 = vmatpush1.bf16.msra.mxu0 0
    %2958 = vmatprep.subr.bf16.mxu0 0
    %2959 = vmatpush1.bf16.msra.mxu0 0
    %2960 = vmatprep.subr.bf16.mxu0 0
    %2961 = vmatpush1.bf16.msra.mxu0 0
    %2962 = vmatprep.subr.bf16.mxu0 0
    %2963 = vmatpush1.bf16.msra.mxu0 0
    %2964 = vmatprep.subr.bf16.mxu0 0
    %2965 = vmatpush1.bf16.msra.mxu0 0
    %2966 = vmatprep.mubr.bf16.mxu0 0
    %2967 = vmatmul.mubr.bf16.gmra.mrb[0].mxu0 %v2865
    %v2968 = vpop.f32.mrb[0].mxu0
    %v2969 = vadd.f32 %v2885, %v2968
    %v2970 = vpop.f32.mrb[0].mxu0
    %v2971 = vpop.f32.mrb[0].mxu0
    %v2972 = vpop.f32.mrb[0].mxu0
    %2973 = vdwg.mxu0
    %v2974 = vpack.c.bf16 %v2969, %v2969
    %v2975 = vld [vmem:[#allocation9] sm:$0xf]
    %v2976 = vld [vmem:[#allocation9 + $0x4] sm:$0xf]
    %v2977 = vld [vmem:[#allocation9 + $0x8] sm:$0xf]
    %v2978 = vld [vmem:[#allocation9 + $0xc] sm:$0xf]
    %v2979 = vld [vmem:[#allocation9 + $0x10] sm:$0xf]
    %v2980 = vld [vmem:[#allocation9 + $0x14] sm:$0xf]
    %v2981 = vld [vmem:[#allocation9 + $0x18] sm:$0xf]
    %v2982 = vld [vmem:[#allocation9 + $0x1c] sm:$0xf]
    %v2983 = vld [vmem:[#allocation9 + $0x20] sm:$0xf]
    %v2984 = vld [vmem:[#allocation9 + $0x24] sm:$0xf]
    %v2985 = vld [vmem:[#allocation9 + $0x28] sm:$0xf]
    %v2986 = vld [vmem:[#allocation9 + $0x2c] sm:$0xf]
    %v2987 = vld [vmem:[#allocation9 + $0x30] sm:$0xf]
    %v2988 = vld [vmem:[#allocation9 + $0x34] sm:$0xf]
    %v2989 = vld [vmem:[#allocation9 + $0x38] sm:$0xf]
    %v2990 = vld [vmem:[#allocation9 + $0x3c] sm:$0xf]
    %v2991 = vlaneseq
    %v2992 = vshrl.u32 %v2991, 7
    %v2993 = vsub.s32 3, %v2992
    %v2994 = vrot.slane %v90, %v2993
    %v3011 = vunpack.c.l.b16 %v2975
    %v3012 = vunpack.c.l.b16 %v2976
    %v3013 = vunpack.c.l.b16 %v2977
    %v3014 = vunpack.c.l.b16 %v2978
    %v3015 = vunpack.c.l.b16 %v2979
    %v3016 = vunpack.c.l.b16 %v2980
    %v3017 = vunpack.c.l.b16 %v2981
    %v3018 = vunpack.c.l.b16 %v2982
    %v3019 = vunpack.c.l.b16 %v2983
    %v3020 = vunpack.c.l.b16 %v2984
    %v3021 = vunpack.c.l.b16 %v2985
    %v3022 = vunpack.c.l.b16 %v2986
    %v3023 = vunpack.c.l.b16 %v2987
    %v3024 = vunpack.c.l.b16 %v2988
    %v3025 = vunpack.c.l.b16 %v2989
    %v3026 = vunpack.c.l.b16 %v2990
    %v3027 = vpack.c.b16 %v3012, %v3011
    %v3028 = vpack.c.b16 %v3014, %v3013
    %v3029 = vpack.c.b16 %v3016, %v3015
    %v3030 = vpack.c.b16 %v3018, %v3017
    %v3031 = vpack.c.b16 %v3020, %v3019
    %v3032 = vpack.c.b16 %v3022, %v3021
    %v3033 = vpack.c.b16 %v3024, %v3023
    %v3034 = vpack.c.b16 %v3026, %v3025
    %3043 = vmatprep.subr.bf16.mxu0 0
    %3044 = vmatpush1.bf16.msra.mxu0 %v3027
    %3045 = vmatprep.subr.bf16.mxu0 0
    %3046 = vmatpush1.bf16.msra.mxu0 %v3028
    %3047 = vmatprep.subr.bf16.mxu0 0
    %3048 = vmatpush1.bf16.msra.mxu0 %v3029
    %3049 = vmatprep.subr.bf16.mxu0 0
    %3050 = vmatpush1.bf16.msra.mxu0 %v3030
    %3051 = vmatprep.subr.bf16.mxu0 0
    %3052 = vmatpush1.bf16.msra.mxu0 %v3031
    %3053 = vmatprep.subr.bf16.mxu0 0
    %3054 = vmatpush1.bf16.msra.mxu0 %v3032
    %3055 = vmatprep.subr.bf16.mxu0 0
    %3056 = vmatpush1.bf16.msra.mxu0 %v3033
    %3057 = vmatprep.subr.bf16.mxu0 0
    %3058 = vmatpush1.bf16.msra.mxu0 %v3034
    %3059 = vmatprep.subr.bf16.mxu0 0
    %3060 = vmatpush1.bf16.msra.mxu0 0
    %3061 = vmatprep.subr.bf16.mxu0 0
    %3062 = vmatpush1.bf16.msra.mxu0 0
    %3063 = vmatprep.subr.bf16.mxu0 0
    %3064 = vmatpush1.bf16.msra.mxu0 0
    %3065 = vmatprep.subr.bf16.mxu0 0
    %3066 = vmatpush1.bf16.msra.mxu0 0
    %3067 = vmatprep.subr.bf16.mxu0 0
    %3068 = vmatpush1.bf16.msra.mxu0 0
    %3069 = vmatprep.subr.bf16.mxu0 0
    %3070 = vmatpush1.bf16.msra.mxu0 0
    %3071 = vmatprep.subr.bf16.mxu0 0
    %3072 = vmatpush1.bf16.msra.mxu0 0
    %3073 = vmatprep.subr.bf16.mxu0 0
    %3074 = vmatpush1.bf16.msra.mxu0 0
    %3075 = vmatprep.mubr.bf16.mxu0 0
    %3076 = vmatmul.mubr.bf16.gmra.mrb[0].mxu0 %v2974
    %v3077 = vpop.f32.mrb[0].mxu0
    %v3078 = vadd.f32 %v2994, %v3077
    %v3079 = vpop.f32.mrb[0].mxu0
    %v3080 = vpop.f32.mrb[0].mxu0
    %v3081 = vpop.f32.mrb[0].mxu0
    %3082 = vdwg.mxu0
    %vm3083 = vcmask 15360
    %3084 = vst.msk [vmem:[%s6] sm:$0xff] %vm3083, %v3078
    // Predicated region
    $region46: #{tpu_custom_call.1} parent=1 // pred_check
      _
    $region47: #{tpu_custom_call.1} parent=1 // pred_check_branch
      %3086 = sbr.rel (0) target = $region49
    $region48: #{tpu_custom_call.1} parent=1 // pred_region
      _
    $region49: #{tpu_custom_call.1} parent=1 // pred_fallthru
      _
    // Predicated region
    $region50: #{tpu_custom_call.1} parent=1 // pred_check
      _
    $region51: #{tpu_custom_call.1} parent=1 // pred_check_branch
      %3088 = sbr.rel (0) target = $region53
    $region52: #{tpu_custom_call.1} parent=1 // pred_region
      _
    $region53: #{tpu_custom_call.1} parent=1 // pred_fallthru
      _
    %3089 = vsyncpa [#allocation3], 1
    %3090 = vsyncpa [#allocation5], 1
    %3091 = vsyncpa [#allocation8], 1

</llo_original>
